<compile_context>
chip_gen: v5e
topology: v5e:2x2
jax: 0.10.0
libtpu: 0.0.40
codegen_flags: <defaults>
</compile_context>

<pallas_src>
import functools

import jax
import jax.numpy as jnp
import numpy as np
from jax import lax
from jax.experimental import pallas as pl
from jax.experimental.pallas import tpu as pltpu

BN_EPS = 1e-5


def _round_up(x, m):
    return (x + m - 1) // m * m


def _vmem_capacity_bytes():
    try:
        return int(pltpu.get_tpu_info().vmem_capacity_bytes)
    except Exception:
        return 64 * 1024 * 1024  # v7x per-TensorCore floor -> safe everywhere


def _pick_tile_rows(Hout, Wp, Cin, Cout, K, vmem_budget, lane_target, max_rows):
    """Largest-that-fits row tile.  Prefers the whole image (HB==1: no halo, no
    staging, no lane padding); otherwise the smallest fitting divisor whose lane
    extent reaches `lane_target` (keeps a few tiles for pipelining)."""
    divs = [d for d in range(1, Hout + 1) if Hout % d == 0]
    if max_rows is not None:
        capped = [d for d in divs if d <= max_rows]
        divs = capped if capped else [min(divs)]

    def step_bytes(th):
        hb = Hout // th
        thw = th * Wp if hb == 1 else _round_up(th * Wp, 128)
        slab = (K - 1) * Wp + (K - 1) + thw
        return (2 * Cin * slab * 2          # double-buffered bf16 input block
                + 2 * Cout * thw * 4        # double-buffered f32 output block
                + K * K * Cin * thw * 2     # im2col VMEM scratch
                + 2 * Cout * thw * 4        # matmul result + epilogue temporaries
                + (2 << 20))                # slack for compiler scratch

    fit = [d for d in divs if step_bytes(d) <= vmem_budget]
    if not fit:
        fit = [min(divs)]
    if Hout in fit:
        return Hout
    big = [d for d in fit if d * Wp >= lane_target]
    return min(big) if big else max(fit)


@functools.partial(jax.jit, static_argnames=("tile_rows", "lane_target"))
def conv_transpose_block(x, w_ct, bias, gamma, beta, tile_rows=None, lane_target=16384):
    """Forward pass of ConvTransposeBlock (k=3, stride=1, padding=1, BN train-mode,
    ReLU, no dropout).

    x      : (N, Cin, H, W)    float32, NCHW (PyTorch convention)
    w_ct   : (Cin, Cout, K, K) PyTorch ConvTranspose2d weight layout
    bias   : (Cout,)           ConvTranspose2d bias (cancels exactly under train-mode BN)
    gamma, beta : (Cout,)      BatchNorm affine parameters
    tile_rows  : optional cap on output rows per grid step (None = auto)
    returns (N, Cout, H, W)
    """
    N, Cin, H, W_in = x.shape
    _, Cout, K, _ = w_ct.shape
    padding = 1                      # the module hard-codes padding=1 (stride=1 default)
    pad_eq = K - 1 - padding         # zero padding of the equivalent forward conv
    Hout = H + K - 1 - 2 * padding
    Wout = W_in + K - 1 - 2 * padding
    Hp = H + 2 * pad_eq
    Wp = W_in + 2 * pad_eq
    KK = K * K

    # ---- generation-aware VMEM budgeting ----
    vmem_cap = _vmem_capacity_bytes()
    vmem_limit = int(min(vmem_cap - (8 << 20), 100 << 20))    # 56 MiB on v7x, 100 MiB on 128-MiB parts
    tile_budget = int(min(0.45 * vmem_cap, 56 << 20))

    th = _pick_tile_rows(Hout, Wp, Cin, Cout, K, tile_budget, lane_target, tile_rows)
    HB = Hout // th
    THW = th * Wp                                             # valid lane extent of a tile
    THW_blk = THW if HB == 1 else _round_up(THW, 128)         # 128-aligned block lanes when tiled
    LEN = (K - 1) * Wp + (K - 1) + THW_blk                    # input lane extent per block

    # ---- weights: flip spatially (transposed conv -> ordinary conv); rows = Cout,
    # columns = (kh, kw, ci) to match the im2col row order built in the kernel.
    w_flip = w_ct.astype(jnp.float32)[:, :, ::-1, ::-1]                       # (Cin, Cout, K, K)
    w2 = jnp.transpose(w_flip, (1, 2, 3, 0)).reshape(Cout, KK * Cin)
    w2 = w2.astype(jnp.bfloat16)                                              # bf16 MXU operand

    # ---- input: bf16 FIRST, then pad spatially, flatten (Hp, Wp) -> lanes, tail pad.
    x_bf = x.astype(jnp.bfloat16)
    x_pad = jnp.pad(x_bf, ((0, 0), (0, 0), (pad_eq, pad_eq), (pad_eq, pad_eq)))
    flat_needed = (HB - 1) * THW + LEN
    x_flat = jnp.pad(x_pad.reshape(N, Cin, Hp * Wp),
                     ((0, 0), (0, 0), (0, flat_needed - Hp * Wp)))

    if HB == 1:
        # Common case: whole padded row-plane per block -> no staging, no halo copy.
        x_in = x_flat                                                         # (N, Cin, LEN)
        x_spec = pl.BlockSpec((None, Cin, LEN), lambda n, hb: (n, 0, 0))
    else:
        # Fallback for images whose row-plane exceeds the VMEM budget: overlapping bf16
        # slabs (only a (K-1)-row halo duplicated per tile).
        slabs = [lax.slice_in_dim(x_flat, hb * THW, hb * THW + LEN, axis=2)
                 for hb in range(HB)]
        x_in = jnp.stack(slabs, axis=1)                                       # (N, HB, Cin, LEN)
        x_spec = pl.BlockSpec((None, None, Cin, LEN), lambda n, hb: (n, hb, 0, 0))

    # Precomputed valid-lane mask (excludes padded-width columns and 128-pad tail lanes).
    lane_idx = np.arange(THW_blk)
    mask_np = ((lane_idx < THW) & ((lane_idx % Wp) < Wout)).astype(np.float32)
    mask = jnp.asarray(mask_np).reshape(1, THW_blk)
    cnt_t = float(th * Wout)                                   # valid elements per tile/channel
    taps = tuple(kh * Wp + kw for kh in range(K) for kw in range(K))

    # ------------------------------ kernels ------------------------------
    def _im2col_matmul(x_ref, w_ref, m_ref):
        """Build the (KK*Cin, THW_blk) bf16 im2col operand from statically-shifted lane
        slices of the Cin-row input, then one MXU matmul -> (Cout, THW_blk) f32."""
        for t, s0 in enumerate(taps):
            m_ref[t * Cin:(t + 1) * Cin, :] = x_ref[:, s0:s0 + THW_blk]
        return jnp.dot(w_ref[...], m_ref[...], preferred_element_type=jnp.float32)

    def _pass1_kernel(x_ref, w_ref, mask_ref, stat_ref, m_ref):
        # Tile-centered per-channel statistics, accumulated across the hb axis in the
        # resident output block (Chan/Welford merge) -> one (Cout, 2) block per image.
        acc = _im2col_matmul(x_ref, w_ref, m_ref)              # (Cout, THW_blk) f32
        msk = mask_ref[...]                                    # (1, THW_blk)
        a = acc * msk
        s_t = jnp.sum(a, axis=1, keepdims=True)                # (Cout, 1) tile sum
        mean_t = s_t * (1.0 / cnt_t)
        d = (acc - mean_t) * msk
        q_t = jnp.sum(d * d, axis=1, keepdims=True)            # (Cout, 1) tile-centered M2
        hb = pl.program_id(1)

        @pl.when(hb == 0)
        def _():
            stat_ref[...] = jnp.concatenate([s_t, q_t], axis=1)

        @pl.when(hb != 0)
        def _():
            s_run = stat_ref[:, 0:1]
            m2_run = stat_ref[:, 1:2]
            n_a = hb.astype(jnp.float32) * cnt_t
            delta = mean_t - s_run / n_a
            corr = delta * delta * (n_a * cnt_t / (n_a + cnt_t))
            stat_ref[...] = jnp.concatenate([s_run + s_t, m2_run + q_t + corr], axis=1)

    def _pass2_kernel(x_ref, w_ref, scale_ref, shift_ref, o_ref, m_ref):
        # Recompute the conv tile and apply the fused BN affine + ReLU.
        # (BN scale is applied here, not folded into the bf16 weight, to avoid an extra
        # weight re-rounding; the (Cout,1) multiply hides under the output DMA.)
        acc = _im2col_matmul(x_ref, w_ref, m_ref)
        y = acc * scale_ref[...] + shift_ref[...]
        o_ref[...] = jnp.maximum(y, 0.0).astype(o_ref.dtype)

    w_spec = pl.BlockSpec((Cout, KK * Cin), lambda n, hb: (0, 0))
    mask_spec = pl.BlockSpec((1, THW_blk), lambda n, hb: (0, 0))
    vec_spec = pl.BlockSpec((Cout, 1), lambda n, hb: (0, 0))
    m_scratch = pltpu.VMEM((KK * Cin, THW_blk), jnp.bfloat16)

    in_bytes = int(x_in.size) * 2
    conv_flops = 2 * N * HB * (KK * Cin) * Cout * THW_blk

    # ---- pass 1: per-image batch statistics (accumulated over the hb axis) ----
    stats = pl.pallas_call(
        _pass1_kernel,
        out_shape=jax.ShapeDtypeStruct((N, Cout, 2), jnp.float32),
        grid_spec=pltpu.PrefetchScalarGridSpec(
            num_scalar_prefetch=0,
            grid=(N, HB),
            in_specs=[x_spec, w_spec, mask_spec],
            out_specs=pl.BlockSpec((None, Cout, 2), lambda n, hb: (n, 0, 0)),
            scratch_shapes=[m_scratch],
        ),
        compiler_params=pltpu.CompilerParams(
            dimension_semantics=("parallel", "arbitrary"),
            vmem_limit_bytes=vmem_limit),
        cost_estimate=pl.CostEstimate(
            flops=conv_flops, transcendentals=0,
            bytes_accessed=in_bytes + N * Cout * 2 * 4),
    )(x_in, w2, mask)

    # ---- combine per-image (sum, centered-M2) into global batch mean / variance ----
    cnt_img = float(Hout * Wout)
    total = float(N) * cnt_img
    s_img = stats[:, :, 0]                                     # (N, Cout)
    m2_img = stats[:, :, 1]
    mean_c = jnp.sum(s_img, axis=0) / total                    # batch mean of conv (no bias)
    mean_img = s_img / cnt_img
    m2_tot = jnp.sum(m2_img, axis=0) + cnt_img * jnp.sum(
        (mean_img - mean_c[None, :]) ** 2, axis=0)
    var_c = jnp.maximum(m2_tot / total, 0.0)                   # variance is bias-invariant
    inv_std = lax.rsqrt(var_c + BN_EPS)
    scale = gamma.astype(jnp.float32) * inv_std
    # (conv + bias - (mean_c + bias)) * scale + beta == conv*scale + (beta - mean_c*scale)
    shift = beta.astype(jnp.float32) - mean_c * scale
    scale2 = scale.reshape(Cout, 1)
    shift2 = shift.reshape(Cout, 1)
    del bias  # the ConvTranspose2d bias cancels exactly under train-mode BatchNorm

    # ---- pass 2: conv + fused BN affine + ReLU, lane-dense (Cout, THW_blk) blocks ----
    y_flat = pl.pallas_call(
        _pass2_kernel,
        out_shape=jax.ShapeDtypeStruct((N, Cout, HB * THW_blk), jnp.float32),
        grid_spec=pltpu.PrefetchScalarGridSpec(
            num_scalar_prefetch=0,
            grid=(N, HB),
            in_specs=[x_spec, w_spec, vec_spec, vec_spec],
            out_specs=pl.BlockSpec((None, Cout, THW_blk), lambda n, hb: (n, 0, hb)),
            scratch_shapes=[m_scratch],
        ),
        compiler_params=pltpu.CompilerParams(
            dimension_semantics=("parallel", "parallel"),      # megacore on multi-core parts
            vmem_limit_bytes=vmem_limit),
        cost_estimate=pl.CostEstimate(
            flops=conv_flops, transcendentals=0,
            bytes_accessed=in_bytes + N * HB * Cout * THW_blk * 4),
    )(x_in, w2, scale2, shift2)

    # ---- epilogue: metadata reshapes + narrow trims only (no transpose) ----
    y = y_flat.reshape(N, Cout, HB, THW_blk)[:, :, :, :THW]
    y = y.reshape(N, Cout, HB, th, Wp)[..., :Wout]
    return y.reshape(N, Cout, Hout, Wout)


def _reference(x, w_ct, bias, gamma, beta):
    """Pure-JAX reference with the same math.  Inputs are bf16-rounded (the kernel
    feeds bf16 operands to the MXU) and all accumulation is f32 at HIGHEST precision."""
    N, Cin, H, W = x.shape
    _, Cout, K, _ = w_ct.shape
    padding = 1
    pad_eq = K - 1 - padding
    Hout = H + K - 1 - 2 * padding
    Wout = W + K - 1 - 2 * padding

    xf = x.astype(jnp.bfloat16).astype(jnp.float32)
    wf = w_ct.astype(jnp.bfloat16).astype(jnp.float32)
    w_eq = jnp.transpose(wf[:, :, ::-1, ::-1], (2, 3, 0, 1))           # (K, K, Cin, Cout)
    x_nhwc = jnp.transpose(xf, (0, 2, 3, 1))
    x_pad = jnp.pad(x_nhwc, ((0, 0), (pad_eq, pad_eq), (pad_eq, pad_eq), (0, 0)))

    acc = jnp.zeros((N, Hout, Wout, Cout), jnp.float32)
    for kh in range(K):
        for kw in range(K):
            acc = acc + jnp.einsum(
                "nhwc,cd->nhwd",
                x_pad[:, kh:kh + Hout, kw:kw + Wout, :],
                w_eq[kh, kw],
                precision=jax.lax.Precision.HIGHEST,
            )
    acc = acc + bias.reshape(1, 1, 1, Cout)
    mean = acc.mean(axis=(0, 1, 2), keepdims=True)
    var = ((acc - mean) ** 2).mean(axis=(0, 1, 2), keepdims=True)
    y = (acc - mean) / jnp.sqrt(var + BN_EPS)
    y = y * gamma.reshape(1, 1, 1, Cout) + beta.reshape(1, 1, 1, Cout)
    y = jnp.maximum(y, 0.0)
    return jnp.transpose(y, (0, 3, 1, 2))


if __name__ == "__main__":
    # Small shapes consistent with the module: batch=2, in_ch=4, out_ch=8, 16x16.
    N, Cin, Cout, H, W, K = 2, 4, 8, 16, 16, 3

    key = jax.random.PRNGKey(0)
    kx, kw, kb, kg, kbe = jax.random.split(key, 5)
    x = jax.random.normal(kx, (N, Cin, H, W), dtype=jnp.float32)
    w_ct = 0.1 * jax.random.normal(kw, (Cin, Cout, K, K), dtype=jnp.float32)
    bias = 0.1 * jax.random.normal(kb, (Cout,), dtype=jnp.float32)
    # PyTorch default BN init is ones/zeros; use non-trivial values to exercise the
    # affine path of the kernel.
    gamma = 1.0 + 0.1 * jax.random.normal(kg, (Cout,), dtype=jnp.float32)
    beta = 0.1 * jax.random.normal(kbe, (Cout,), dtype=jnp.float32)

    ref = jax.block_until_ready(_reference(x, w_ct, bias, gamma, beta))

    # Auto tiling: whole image per grid step (HB == 1), no input staging, no lane pad.
    out = jax.block_until_ready(conv_transpose_block(x, w_ct, bias, gamma, beta))
    assert out.shape == (N, Cout, H, W), out.shape
    np.testing.assert_allclose(np.asarray(out), np.asarray(ref), rtol=5e-3, atol=5e-3)

    # Forced multi-tile path: exercises the slab fallback, 128-padded output blocks and
    # the Chan/Welford merge of pass-1 statistics across row tiles.
    out2 = jax.block_until_ready(
        conv_transpose_block(x, w_ct, bias, gamma, beta, tile_rows=8)
    )
    np.testing.assert_allclose(np.asarray(out2), np.asarray(ref), rtol=5e-3, atol=5e-3)

    print("KERNEL_OK")
</pallas_src>

<mosaic_0001>
module attributes {stable_mosaic.version = 11 : i64} {
  func.func @_pass1_kernel(%arg0: i32, %arg1: i32, %arg2: memref<1x4x326xbf16, #tpu.memory_space<vmem>>, %arg3: memref<8x36xbf16, #tpu.memory_space<vmem>>, %arg4: memref<1x288xf32, #tpu.memory_space<vmem>>, %arg5: memref<1x8x2xf32, #tpu.memory_space<vmem>>, %arg6: memref<36x288xbf16, #tpu.memory_space<vmem>>) attributes {dimension_semantics = [#tpu.dimension_semantics<parallel>, #tpu.dimension_semantics<arbitrary>], iteration_bounds = array<i64: 2, 1>, scalar_prefetch = 0 : i64, scratch_operands = 1 : i64, tpu.core_type = #tpu.core_type<tc>, window_params = [{transform_indices = @transform_0, window_bounds = array<i64: 1, 4, 326>}, {pipeline_mode = #tpu.pipeline_mode<synchronous>, transform_indices = @transform_1, window_bounds = array<i64: 8, 36>}, {pipeline_mode = #tpu.pipeline_mode<synchronous>, transform_indices = @transform_2, window_bounds = array<i64: 1, 288>}, {transform_indices = @transform_3, window_bounds = array<i64: 1, 8, 2>}]} {
    %c0 = arith.constant 0 : index
    %c0_0 = arith.constant 0 : index
    %c0_1 = arith.constant 0 : index
    %0 = vector.load %arg2[%c0, %c0_0, %c0_1] : memref<1x4x326xbf16, #tpu.memory_space<vmem>>, vector<1x4x288xbf16>
    %1 = vector.shape_cast %0 : vector<1x4x288xbf16> to vector<4x288xbf16>
    %c0_2 = arith.constant 0 : index
    %c0_3 = arith.constant 0 : index
    %2 = vector.load %arg6[%c0_2, %c0_3] : memref<36x288xbf16, #tpu.memory_space<vmem>>, vector<4x288xbf16>
    tpu.vector_store %arg6[%c0_2, %c0_3], %1 {strides = array<i32>} : memref<36x288xbf16, #tpu.memory_space<vmem>>, vector<4x288xbf16>,
    %c0_4 = arith.constant 0 : index
    %c0_5 = arith.constant 0 : index
    %c1 = arith.constant 1 : index
    %3 = vector.load %arg2[%c0_4, %c0_5, %c1] : memref<1x4x326xbf16, #tpu.memory_space<vmem>>, vector<1x4x288xbf16>
    %4 = vector.shape_cast %3 : vector<1x4x288xbf16> to vector<4x288xbf16>
    %c4 = arith.constant 4 : index
    %c0_6 = arith.constant 0 : index
    %5 = vector.load %arg6[%c4, %c0_6] : memref<36x288xbf16, #tpu.memory_space<vmem>>, vector<4x288xbf16>
    tpu.vector_store %arg6[%c4, %c0_6], %4 {strides = array<i32>} : memref<36x288xbf16, #tpu.memory_space<vmem>>, vector<4x288xbf16>,
    %c0_7 = arith.constant 0 : index
    %c0_8 = arith.constant 0 : index
    %c2 = arith.constant 2 : index
    %6 = vector.load %arg2[%c0_7, %c0_8, %c2] : memref<1x4x326xbf16, #tpu.memory_space<vmem>>, vector<1x4x288xbf16>
    %7 = vector.shape_cast %6 : vector<1x4x288xbf16> to vector<4x288xbf16>
    %c8 = arith.constant 8 : index
    %c0_9 = arith.constant 0 : index
    %8 = vector.load %arg6[%c8, %c0_9] : memref<36x288xbf16, #tpu.memory_space<vmem>>, vector<4x288xbf16>
    tpu.vector_store %arg6[%c8, %c0_9], %7 {strides = array<i32>} : memref<36x288xbf16, #tpu.memory_space<vmem>>, vector<4x288xbf16>,
    %c0_10 = arith.constant 0 : index
    %c0_11 = arith.constant 0 : index
    %c18 = arith.constant 18 : index
    %9 = vector.load %arg2[%c0_10, %c0_11, %c18] : memref<1x4x326xbf16, #tpu.memory_space<vmem>>, vector<1x4x288xbf16>
    %10 = vector.shape_cast %9 : vector<1x4x288xbf16> to vector<4x288xbf16>
    %c12 = arith.constant 12 : index
    %c0_12 = arith.constant 0 : index
    %11 = vector.load %arg6[%c12, %c0_12] : memref<36x288xbf16, #tpu.memory_space<vmem>>, vector<4x288xbf16>
    tpu.vector_store %arg6[%c12, %c0_12], %10 {strides = array<i32>} : memref<36x288xbf16, #tpu.memory_space<vmem>>, vector<4x288xbf16>,
    %c0_13 = arith.constant 0 : index
    %c0_14 = arith.constant 0 : index
    %c19 = arith.constant 19 : index
    %12 = vector.load %arg2[%c0_13, %c0_14, %c19] : memref<1x4x326xbf16, #tpu.memory_space<vmem>>, vector<1x4x288xbf16>
    %13 = vector.shape_cast %12 : vector<1x4x288xbf16> to vector<4x288xbf16>
    %c16 = arith.constant 16 : index
    %c0_15 = arith.constant 0 : index
    %14 = vector.load %arg6[%c16, %c0_15] : memref<36x288xbf16, #tpu.memory_space<vmem>>, vector<4x288xbf16>
    tpu.vector_store %arg6[%c16, %c0_15], %13 {strides = array<i32>} : memref<36x288xbf16, #tpu.memory_space<vmem>>, vector<4x288xbf16>,
    %c0_16 = arith.constant 0 : index
    %c0_17 = arith.constant 0 : index
    %c20 = arith.constant 20 : index
    %15 = vector.load %arg2[%c0_16, %c0_17, %c20] : memref<1x4x326xbf16, #tpu.memory_space<vmem>>, vector<1x4x288xbf16>
    %16 = vector.shape_cast %15 : vector<1x4x288xbf16> to vector<4x288xbf16>
    %c20_18 = arith.constant 20 : index
    %c0_19 = arith.constant 0 : index
    %17 = vector.load %arg6[%c20_18, %c0_19] : memref<36x288xbf16, #tpu.memory_space<vmem>>, vector<4x288xbf16>
    tpu.vector_store %arg6[%c20_18, %c0_19], %16 {strides = array<i32>} : memref<36x288xbf16, #tpu.memory_space<vmem>>, vector<4x288xbf16>,
    %c0_20 = arith.constant 0 : index
    %c0_21 = arith.constant 0 : index
    %c36 = arith.constant 36 : index
    %18 = vector.load %arg2[%c0_20, %c0_21, %c36] : memref<1x4x326xbf16, #tpu.memory_space<vmem>>, vector<1x4x288xbf16>
    %19 = vector.shape_cast %18 : vector<1x4x288xbf16> to vector<4x288xbf16>
    %c24 = arith.constant 24 : index
    %c0_22 = arith.constant 0 : index
    %20 = vector.load %arg6[%c24, %c0_22] : memref<36x288xbf16, #tpu.memory_space<vmem>>, vector<4x288xbf16>
    tpu.vector_store %arg6[%c24, %c0_22], %19 {strides = array<i32>} : memref<36x288xbf16, #tpu.memory_space<vmem>>, vector<4x288xbf16>,
    %c0_23 = arith.constant 0 : index
    %c0_24 = arith.constant 0 : index
    %c37 = arith.constant 37 : index
    %21 = vector.load %arg2[%c0_23, %c0_24, %c37] : memref<1x4x326xbf16, #tpu.memory_space<vmem>>, vector<1x4x288xbf16>
    %22 = vector.shape_cast %21 : vector<1x4x288xbf16> to vector<4x288xbf16>
    %c28 = arith.constant 28 : index
    %c0_25 = arith.constant 0 : index
    %23 = vector.load %arg6[%c28, %c0_25] : memref<36x288xbf16, #tpu.memory_space<vmem>>, vector<4x288xbf16>
    tpu.vector_store %arg6[%c28, %c0_25], %22 {strides = array<i32>} : memref<36x288xbf16, #tpu.memory_space<vmem>>, vector<4x288xbf16>,
    %c0_26 = arith.constant 0 : index
    %c0_27 = arith.constant 0 : index
    %c38 = arith.constant 38 : index
    %24 = vector.load %arg2[%c0_26, %c0_27, %c38] : memref<1x4x326xbf16, #tpu.memory_space<vmem>>, vector<1x4x288xbf16>
    %25 = vector.shape_cast %24 : vector<1x4x288xbf16> to vector<4x288xbf16>
    %c32 = arith.constant 32 : index
    %c0_28 = arith.constant 0 : index
    %26 = vector.load %arg6[%c32, %c0_28] : memref<36x288xbf16, #tpu.memory_space<vmem>>, vector<4x288xbf16>
    tpu.vector_store %arg6[%c32, %c0_28], %25 {strides = array<i32>} : memref<36x288xbf16, #tpu.memory_space<vmem>>, vector<4x288xbf16>,
    %c0_29 = arith.constant 0 : index
    %c0_30 = arith.constant 0 : index
    %27 = vector.load %arg3[%c0_29, %c0_30] : memref<8x36xbf16, #tpu.memory_space<vmem>>, vector<8x36xbf16>
    %c0_31 = arith.constant 0 : index
    %c0_32 = arith.constant 0 : index
    %28 = vector.load %arg6[%c0_31, %c0_32] : memref<36x288xbf16, #tpu.memory_space<vmem>>, vector<36x288xbf16>
    %cst = arith.constant dense<0.000000e+00> : vector<8x288xf32>
    %29 = tpu.matmul %27, %28, %cst {dimension_numbers = #tpu.dot_dimension_numbers<[1], [0], [0], [1], [0, 0, 1, 1], [], []>} : vector<8x36xbf16>, vector<36x288xbf16>, vector<8x288xf32> -> vector<8x288xf32>
    %c0_33 = arith.constant 0 : index
    %c0_34 = arith.constant 0 : index
    %30 = vector.load %arg4[%c0_33, %c0_34] : memref<1x288xf32, #tpu.memory_space<vmem>>, vector<1x288xf32>
    %31 = vector.broadcast %30 : vector<1x288xf32> to vector<8x288xf32>
    %32 = arith.mulf %29, %31 : vector<8x288xf32>
    %cst_35 = arith.constant dense<0.000000e+00> : vector<8xf32>
    %33 = vector.multi_reduction <add>, %32, %cst_35 [1] : vector<8x288xf32> to vector<8xf32>
    %34 = vector.shape_cast %33 : vector<8xf32> to vector<8x1xf32>
    %cst_36 = arith.constant 3.906250e-03 : f32
    %35 = vector.broadcast %cst_36 : f32 to vector<8x1xf32>
    %36 = arith.mulf %34, %35 : vector<8x1xf32>
    %37 = vector.broadcast %36 : vector<8x1xf32> to vector<8x288xf32>
    %38 = arith.subf %29, %37 : vector<8x288xf32>
    %39 = vector.broadcast %30 : vector<1x288xf32> to vector<8x288xf32>
    %40 = arith.mulf %38, %39 : vector<8x288xf32>
    %41 = arith.mulf %40, %40 : vector<8x288xf32>
    %cst_37 = arith.constant dense<0.000000e+00> : vector<8xf32>
    %42 = vector.multi_reduction <add>, %41, %cst_37 [1] : vector<8x288xf32> to vector<8xf32>
    %43 = vector.shape_cast %42 : vector<8xf32> to vector<8x1xf32>
    %c0_i32 = arith.constant 0 : i32
    %44 = arith.cmpi eq, %arg1, %c0_i32 : i32
    %45 = arith.extui %44 : i1 to i32
    %c0_i32_38 = arith.constant 0 : i32
    %46 = arith.cmpi ne, %45, %c0_i32_38 : i32
    scf.if %46 {
      %50 = tpu.concatenate %34, %43 in 1 : vector<8x1xf32>, vector<8x1xf32> -> vector<8x2xf32>
      %c0_41 = arith.constant 0 : index
      %c0_42 = arith.constant 0 : index
      %c0_43 = arith.constant 0 : index
      %51 = vector.load %arg5[%c0_41, %c0_42, %c0_43] : memref<1x8x2xf32, #tpu.memory_space<vmem>>, vector<1x8x2xf32>
      %52 = vector.shape_cast %51 : vector<1x8x2xf32> to vector<8x2xf32>
      %53 = vector.shape_cast %50 : vector<8x2xf32> to vector<1x8x2xf32>
      tpu.vector_store %arg5[%c0_41, %c0_42, %c0_43], %53 {strides = array<i32>} : memref<1x8x2xf32, #tpu.memory_space<vmem>>, vector<1x8x2xf32>,
    } else {
    }
    %c0_i32_39 = arith.constant 0 : i32
    %47 = arith.cmpi ne, %arg1, %c0_i32_39 : i32
    %48 = arith.extui %47 : i1 to i32
    %c0_i32_40 = arith.constant 0 : i32
    %49 = arith.cmpi ne, %48, %c0_i32_40 : i32
    scf.if %49 {
      %c0_41 = arith.constant 0 : index
      %c0_42 = arith.constant 0 : index
      %c0_43 = arith.constant 0 : index
      %50 = vector.load %arg5[%c0_41, %c0_42, %c0_43] : memref<1x8x2xf32, #tpu.memory_space<vmem>>, vector<1x8x1xf32>
      %51 = vector.shape_cast %50 : vector<1x8x1xf32> to vector<8x1xf32>
      %c0_44 = arith.constant 0 : index
      %c0_45 = arith.constant 0 : index
      %c1_46 = arith.constant 1 : index
      %52 = vector.load %arg5[%c0_44, %c0_45, %c1_46] : memref<1x8x2xf32, #tpu.memory_space<vmem>>, vector<1x8x1xf32>
      %53 = vector.shape_cast %52 : vector<1x8x1xf32> to vector<8x1xf32>
      %54 = arith.sitofp %arg1 : i32 to f32
      %cst_47 = arith.constant 2.560000e+02 : f32
      %55 = arith.mulf %54, %cst_47 : f32
      %56 = vector.broadcast %55 : f32 to vector<8x1xf32>
      %57 = arith.divf %51, %56 : vector<8x1xf32>
      %58 = arith.subf %36, %57 : vector<8x1xf32>
      %59 = arith.mulf %58, %58 : vector<8x1xf32>
      %cst_48 = arith.constant 2.560000e+02 : f32
      %60 = arith.mulf %55, %cst_48 : f32
      %cst_49 = arith.constant 2.560000e+02 : f32
      %61 = arith.addf %55, %cst_49 : f32
      %62 = arith.divf %60, %61 : f32
      %63 = vector.broadcast %62 : f32 to vector<8x1xf32>
      %64 = arith.mulf %59, %63 : vector<8x1xf32>
      %65 = arith.addf %51, %34 : vector<8x1xf32>
      %66 = arith.addf %53, %43 : vector<8x1xf32>
      %67 = arith.addf %66, %64 : vector<8x1xf32>
      %68 = tpu.concatenate %65, %67 in 1 : vector<8x1xf32>, vector<8x1xf32> -> vector<8x2xf32>
      %c0_50 = arith.constant 0 : index
      %c0_51 = arith.constant 0 : index
      %c0_52 = arith.constant 0 : index
      %69 = vector.load %arg5[%c0_50, %c0_51, %c0_52] : memref<1x8x2xf32, #tpu.memory_space<vmem>>, vector<1x8x2xf32>
      %70 = vector.shape_cast %69 : vector<1x8x2xf32> to vector<8x2xf32>
      %71 = vector.shape_cast %68 : vector<8x2xf32> to vector<1x8x2xf32>
      tpu.vector_store %arg5[%c0_50, %c0_51, %c0_52], %71 {strides = array<i32>} : memref<1x8x2xf32, #tpu.memory_space<vmem>>, vector<1x8x2xf32>,
    } else {
    }
    return
  }
  func.func @transform_0(%arg0: i32, %arg1: i32) -> (i32, i32, i32) {
    %c0_i32 = arith.constant 0 : i32
    %c0_i32_0 = arith.constant 0 : i32
    %c0_i32_1 = arith.constant 0 : i32
    return %arg0, %c0_i32, %c0_i32_0 : i32, i32, i32
  }
  func.func @transform_1(%arg0: i32, %arg1: i32) -> (i32, i32) {
    %c0_i32 = arith.constant 0 : i32
    %c0_i32_0 = arith.constant 0 : i32
    %c0_i32_1 = arith.constant 0 : i32
    return %c0_i32, %c0_i32_0 : i32, i32
  }
  func.func @transform_2(%arg0: i32, %arg1: i32) -> (i32, i32) {
    %c0_i32 = arith.constant 0 : i32
    %c0_i32_0 = arith.constant 0 : i32
    %c0_i32_1 = arith.constant 0 : i32
    return %c0_i32, %c0_i32_0 : i32, i32
  }
  func.func @transform_3(%arg0: i32, %arg1: i32) -> (i32, i32, i32) {
    %c0_i32 = arith.constant 0 : i32
    %c0_i32_0 = arith.constant 0 : i32
    %c0_i32_1 = arith.constant 0 : i32
    return %arg0, %c0_i32, %c0_i32_0 : i32, i32, i32
  }
}

module attributes {stable_mosaic.version = 11 : i64} {
  func.func @_pass2_kernel(%arg0: i32, %arg1: i32, %arg2: memref<1x4x326xbf16, #tpu.memory_space<vmem>>, %arg3: memref<8x36xbf16, #tpu.memory_space<vmem>>, %arg4: memref<8x1xf32, #tpu.memory_space<vmem>>, %arg5: memref<8x1xf32, #tpu.memory_space<vmem>>, %arg6: memref<1x8x288xf32, #tpu.memory_space<vmem>>, %arg7: memref<36x288xbf16, #tpu.memory_space<vmem>>) attributes {dimension_semantics = [#tpu.dimension_semantics<parallel>, #tpu.dimension_semantics<parallel>], iteration_bounds = array<i64: 2, 1>, scalar_prefetch = 0 : i64, scratch_operands = 1 : i64, tpu.core_type = #tpu.core_type<tc>, window_params = [{transform_indices = @transform_0, window_bounds = array<i64: 1, 4, 326>}, {pipeline_mode = #tpu.pipeline_mode<synchronous>, transform_indices = @transform_1, window_bounds = array<i64: 8, 36>}, {pipeline_mode = #tpu.pipeline_mode<synchronous>, transform_indices = @transform_2, window_bounds = array<i64: 8, 1>}, {pipeline_mode = #tpu.pipeline_mode<synchronous>, transform_indices = @transform_3, window_bounds = array<i64: 8, 1>}, {transform_indices = @transform_4, window_bounds = array<i64: 1, 8, 288>}]} {
    %c0 = arith.constant 0 : index
    %c0_0 = arith.constant 0 : index
    %c0_1 = arith.constant 0 : index
    %0 = vector.load %arg2[%c0, %c0_0, %c0_1] : memref<1x4x326xbf16, #tpu.memory_space<vmem>>, vector<1x4x288xbf16>
    %1 = vector.shape_cast %0 : vector<1x4x288xbf16> to vector<4x288xbf16>
    %c0_2 = arith.constant 0 : index
    %c0_3 = arith.constant 0 : index
    %2 = vector.load %arg7[%c0_2, %c0_3] : memref<36x288xbf16, #tpu.memory_space<vmem>>, vector<4x288xbf16>
    tpu.vector_store %arg7[%c0_2, %c0_3], %1 {strides = array<i32>} : memref<36x288xbf16, #tpu.memory_space<vmem>>, vector<4x288xbf16>,
    %c0_4 = arith.constant 0 : index
    %c0_5 = arith.constant 0 : index
    %c1 = arith.constant 1 : index
    %3 = vector.load %arg2[%c0_4, %c0_5, %c1] : memref<1x4x326xbf16, #tpu.memory_space<vmem>>, vector<1x4x288xbf16>
    %4 = vector.shape_cast %3 : vector<1x4x288xbf16> to vector<4x288xbf16>
    %c4 = arith.constant 4 : index
    %c0_6 = arith.constant 0 : index
    %5 = vector.load %arg7[%c4, %c0_6] : memref<36x288xbf16, #tpu.memory_space<vmem>>, vector<4x288xbf16>
    tpu.vector_store %arg7[%c4, %c0_6], %4 {strides = array<i32>} : memref<36x288xbf16, #tpu.memory_space<vmem>>, vector<4x288xbf16>,
    %c0_7 = arith.constant 0 : index
    %c0_8 = arith.constant 0 : index
    %c2 = arith.constant 2 : index
    %6 = vector.load %arg2[%c0_7, %c0_8, %c2] : memref<1x4x326xbf16, #tpu.memory_space<vmem>>, vector<1x4x288xbf16>
    %7 = vector.shape_cast %6 : vector<1x4x288xbf16> to vector<4x288xbf16>
    %c8 = arith.constant 8 : index
    %c0_9 = arith.constant 0 : index
    %8 = vector.load %arg7[%c8, %c0_9] : memref<36x288xbf16, #tpu.memory_space<vmem>>, vector<4x288xbf16>
    tpu.vector_store %arg7[%c8, %c0_9], %7 {strides = array<i32>} : memref<36x288xbf16, #tpu.memory_space<vmem>>, vector<4x288xbf16>,
    %c0_10 = arith.constant 0 : index
    %c0_11 = arith.constant 0 : index
    %c18 = arith.constant 18 : index
    %9 = vector.load %arg2[%c0_10, %c0_11, %c18] : memref<1x4x326xbf16, #tpu.memory_space<vmem>>, vector<1x4x288xbf16>
    %10 = vector.shape_cast %9 : vector<1x4x288xbf16> to vector<4x288xbf16>
    %c12 = arith.constant 12 : index
    %c0_12 = arith.constant 0 : index
    %11 = vector.load %arg7[%c12, %c0_12] : memref<36x288xbf16, #tpu.memory_space<vmem>>, vector<4x288xbf16>
    tpu.vector_store %arg7[%c12, %c0_12], %10 {strides = array<i32>} : memref<36x288xbf16, #tpu.memory_space<vmem>>, vector<4x288xbf16>,
    %c0_13 = arith.constant 0 : index
    %c0_14 = arith.constant 0 : index
    %c19 = arith.constant 19 : index
    %12 = vector.load %arg2[%c0_13, %c0_14, %c19] : memref<1x4x326xbf16, #tpu.memory_space<vmem>>, vector<1x4x288xbf16>
    %13 = vector.shape_cast %12 : vector<1x4x288xbf16> to vector<4x288xbf16>
    %c16 = arith.constant 16 : index
    %c0_15 = arith.constant 0 : index
    %14 = vector.load %arg7[%c16, %c0_15] : memref<36x288xbf16, #tpu.memory_space<vmem>>, vector<4x288xbf16>
    tpu.vector_store %arg7[%c16, %c0_15], %13 {strides = array<i32>} : memref<36x288xbf16, #tpu.memory_space<vmem>>, vector<4x288xbf16>,
    %c0_16 = arith.constant 0 : index
    %c0_17 = arith.constant 0 : index
    %c20 = arith.constant 20 : index
    %15 = vector.load %arg2[%c0_16, %c0_17, %c20] : memref<1x4x326xbf16, #tpu.memory_space<vmem>>, vector<1x4x288xbf16>
    %16 = vector.shape_cast %15 : vector<1x4x288xbf16> to vector<4x288xbf16>
    %c20_18 = arith.constant 20 : index
    %c0_19 = arith.constant 0 : index
    %17 = vector.load %arg7[%c20_18, %c0_19] : memref<36x288xbf16, #tpu.memory_space<vmem>>, vector<4x288xbf16>
    tpu.vector_store %arg7[%c20_18, %c0_19], %16 {strides = array<i32>} : memref<36x288xbf16, #tpu.memory_space<vmem>>, vector<4x288xbf16>,
    %c0_20 = arith.constant 0 : index
    %c0_21 = arith.constant 0 : index
    %c36 = arith.constant 36 : index
    %18 = vector.load %arg2[%c0_20, %c0_21, %c36] : memref<1x4x326xbf16, #tpu.memory_space<vmem>>, vector<1x4x288xbf16>
    %19 = vector.shape_cast %18 : vector<1x4x288xbf16> to vector<4x288xbf16>
    %c24 = arith.constant 24 : index
    %c0_22 = arith.constant 0 : index
    %20 = vector.load %arg7[%c24, %c0_22] : memref<36x288xbf16, #tpu.memory_space<vmem>>, vector<4x288xbf16>
    tpu.vector_store %arg7[%c24, %c0_22], %19 {strides = array<i32>} : memref<36x288xbf16, #tpu.memory_space<vmem>>, vector<4x288xbf16>,
    %c0_23 = arith.constant 0 : index
    %c0_24 = arith.constant 0 : index
    %c37 = arith.constant 37 : index
    %21 = vector.load %arg2[%c0_23, %c0_24, %c37] : memref<1x4x326xbf16, #tpu.memory_space<vmem>>, vector<1x4x288xbf16>
    %22 = vector.shape_cast %21 : vector<1x4x288xbf16> to vector<4x288xbf16>
    %c28 = arith.constant 28 : index
    %c0_25 = arith.constant 0 : index
    %23 = vector.load %arg7[%c28, %c0_25] : memref<36x288xbf16, #tpu.memory_space<vmem>>, vector<4x288xbf16>
    tpu.vector_store %arg7[%c28, %c0_25], %22 {strides = array<i32>} : memref<36x288xbf16, #tpu.memory_space<vmem>>, vector<4x288xbf16>,
    %c0_26 = arith.constant 0 : index
    %c0_27 = arith.constant 0 : index
    %c38 = arith.constant 38 : index
    %24 = vector.load %arg2[%c0_26, %c0_27, %c38] : memref<1x4x326xbf16, #tpu.memory_space<vmem>>, vector<1x4x288xbf16>
    %25 = vector.shape_cast %24 : vector<1x4x288xbf16> to vector<4x288xbf16>
    %c32 = arith.constant 32 : index
    %c0_28 = arith.constant 0 : index
    %26 = vector.load %arg7[%c32, %c0_28] : memref<36x288xbf16, #tpu.memory_space<vmem>>, vector<4x288xbf16>
    tpu.vector_store %arg7[%c32, %c0_28], %25 {strides = array<i32>} : memref<36x288xbf16, #tpu.memory_space<vmem>>, vector<4x288xbf16>,
    %c0_29 = arith.constant 0 : index
    %c0_30 = arith.constant 0 : index
    %27 = vector.load %arg3[%c0_29, %c0_30] : memref<8x36xbf16, #tpu.memory_space<vmem>>, vector<8x36xbf16>
    %c0_31 = arith.constant 0 : index
    %c0_32 = arith.constant 0 : index
    %28 = vector.load %arg7[%c0_31, %c0_32] : memref<36x288xbf16, #tpu.memory_space<vmem>>, vector<36x288xbf16>
    %cst = arith.constant dense<0.000000e+00> : vector<8x288xf32>
    %29 = tpu.matmul %27, %28, %cst {dimension_numbers = #tpu.dot_dimension_numbers<[1], [0], [0], [1], [0, 0, 1, 1], [], []>} : vector<8x36xbf16>, vector<36x288xbf16>, vector<8x288xf32> -> vector<8x288xf32>
    %c0_33 = arith.constant 0 : index
    %c0_34 = arith.constant 0 : index
    %30 = vector.load %arg4[%c0_33, %c0_34] : memref<8x1xf32, #tpu.memory_space<vmem>>, vector<8x1xf32>
    %31 = vector.broadcast %30 : vector<8x1xf32> to vector<8x288xf32>
    %32 = arith.mulf %29, %31 : vector<8x288xf32>
    %c0_35 = arith.constant 0 : index
    %c0_36 = arith.constant 0 : index
    %33 = vector.load %arg5[%c0_35, %c0_36] : memref<8x1xf32, #tpu.memory_space<vmem>>, vector<8x1xf32>
    %34 = vector.broadcast %33 : vector<8x1xf32> to vector<8x288xf32>
    %35 = arith.addf %32, %34 : vector<8x288xf32>
    %cst_37 = arith.constant 0.000000e+00 : f32
    %36 = vector.broadcast %cst_37 : f32 to vector<8x288xf32>
    %37 = arith.maximumf %35, %36 : vector<8x288xf32>
    %c0_38 = arith.constant 0 : index
    %c0_39 = arith.constant 0 : index
    %c0_40 = arith.constant 0 : index
    %38 = vector.load %arg6[%c0_38, %c0_39, %c0_40] : memref<1x8x288xf32, #tpu.memory_space<vmem>>, vector<1x8x288xf32>
    %39 = vector.shape_cast %38 : vector<1x8x288xf32> to vector<8x288xf32>
    %40 = vector.shape_cast %37 : vector<8x288xf32> to vector<1x8x288xf32>
    tpu.vector_store %arg6[%c0_38, %c0_39, %c0_40], %40 {strides = array<i32>} : memref<1x8x288xf32, #tpu.memory_space<vmem>>, vector<1x8x288xf32>,
    return
  }
  func.func @transform_0(%arg0: i32, %arg1: i32) -> (i32, i32, i32) {
    %c0_i32 = arith.constant 0 : i32
    %c0_i32_0 = arith.constant 0 : i32
    %c0_i32_1 = arith.constant 0 : i32
    return %arg0, %c0_i32, %c0_i32_0 : i32, i32, i32
  }
  func.func @transform_1(%arg0: i32, %arg1: i32) -> (i32, i32) {
    %c0_i32 = arith.constant 0 : i32
    %c0_i32_0 = arith.constant 0 : i32
    %c0_i32_1 = arith.constant 0 : i32
    return %c0_i32, %c0_i32_0 : i32, i32
  }
  func.func @transform_2(%arg0: i32, %arg1: i32) -> (i32, i32) {
    %c0_i32 = arith.constant 0 : i32
    %c0_i32_0 = arith.constant 0 : i32
    %c0_i32_1 = arith.constant 0 : i32
    return %c0_i32, %c0_i32_0 : i32, i32
  }
  func.func @transform_3(%arg0: i32, %arg1: i32) -> (i32, i32) {
    %c0_i32 = arith.constant 0 : i32
    %c0_i32_0 = arith.constant 0 : i32
    %c0_i32_1 = arith.constant 0 : i32
    return %c0_i32, %c0_i32_0 : i32, i32
  }
  func.func @transform_4(%arg0: i32, %arg1: i32) -> (i32, i32, i32) {
    %c0_i32 = arith.constant 0 : i32
    %c0_i32_0 = arith.constant 0 : i32
    return %arg0, %c0_i32, %arg1 : i32, i32, i32
  }
}

</mosaic_0001>

<llo_original>
// kernel: conv_transpose_block.2
$region0: #{conv_transpose_block.2}
  #allocation0 [shape = 'u32[]', space=smem, size = 0x4, offset = 0x4, fixed_abs, tag = 'smem constant byte address 0x4 - core index']
  #allocation1 [shape = 'u32[72,128]{1,0:T(1,128)}', space=vmem, size = 0x9000, scoped, tag = 'internal scratch']
  #allocation2 [shape = 'bf16[36,288]{1,0:T(8,128)(2,1)}', space=vmem, size = 0x7800, scoped, tag = 'scratch operand']
  %s0 = inlined_call_operand.vmem [shape: bf16[2,4,326], index: 0, kind: input, shape index: {}]
  %s1 = inlined_call_operand.vmem [shape: bf16[8,36], index: 1, kind: input, shape index: {}]
  %s2 = inlined_call_operand.vmem [shape: f32[1,288], index: 2, kind: input, shape index: {}]
  %s3 = inlined_call_operand.vmem [shape: f32[2,8,2], index: 3, kind: output, shape index: {}]
  %s4 = sld [smem:[#allocation0]]
  $region53: #{conv_transpose_block.2} parent=0
    _
  %s6 = ssub.s32 1, %s4
  %s7 = scalar_select 0, %s6, %s4
  loop: start=0, step=1, limit=4
  $region2: #{conv_transpose_block.2} parent=0 // loop_pre_header
    _
  $region3: #{conv_transpose_block.2} parent=0 // loop_header
    %s9 = sphi 0, %s13
    %p10 = scmp.ge.s32.totalorder %s9, 4
    %s16 = sphi 0, %s28
    %s17 = sphi 0, %s24
    %s18 = sphi 0, %s16
    %s19 = sphi 0, %s17
    %s20 = sphi 0, %s18
    %s21 = sphi 0, %s19
    %s31 = sphi 0, %s33
    %s34 = sphi 0, %s31
    %s35 = sphi 0, %s34
    %s51 = sphi 0, %s35
    %s55 = sphi 0, %s55
    %s57 = sphi 0, %s55
    %s58 = sphi 0, %s57
    %s72 = sphi 0, %s58
    %s76 = sphi 0, %s76
    %s78 = sphi 0, %s76
    %s79 = sphi 0, %s78
    %s93 = sphi 0, %s79
    %s99 = sphi 0, %s101
    %s102 = sphi 0, %s99
    %s103 = sphi 0, %s102
    %s119 = sphi 0, %s103
  $region4: #{conv_transpose_block.2} parent=0 // loop_header_branch
    %12 = sbr.rel (%p10) target = $region8
  $region5: #{conv_transpose_block.2} parent=0 // loop_body
    %s14 = ssub.s32 %s9, 1
    %s15 = ssub.s32 %s9, 2
    %s22 = sadd.s32 1, %s17
    %p23 = scmp.ge.s32.totalorder %s22, 1
    %s24 = scalar_select %p23, 0, %s22
    %s25 = sadd.s32 1, %s16
    %s26 = scalar_select %p23, %s25, %s16
    %p27 = scmp.ge.s32.totalorder %s26, 2
    %s28 = scalar_select %p27, 0, %s26
    %s29 = ssub.s32 %s16, %s28
    %p30 = scmp.eq.s32.totalorder %s29, 0
    %s32 = sadd.s32 %s31, 1
    %s33 = scalar_select %p30, %s31, %s32
    %p36 = pneg %p30
    %p37 = scmp.eq.s32.totalorder %s9, 1
    %p38 = por %p36, %p37
    %p39 = scmp.ne.s32.totalorder %s31, %s34
    %p40 = scmp.eq.s32.totalorder %s9, 0
    %p41 = por %p39, %p40
    %p42 = scmp.ne.s32.totalorder %s31, %s34
    %p43 = scmp.eq.s32.totalorder %s14, 1
    %p44 = por %p42, %p43
    %p45 = scmp.ne.s32.totalorder %s34, %s35
    %p46 = scmp.eq.s32.totalorder %s14, 0
    %p47 = por %p45, %p46
    %p48 = scmp.ne.s32.totalorder %s34, %s35
    %p49 = scmp.eq.s32.totalorder %s15, 1
    %p50 = por %p48, %p49
    %p52 = scmp.ne.s32.totalorder %s35, %s51
    %p53 = scmp.eq.s32.totalorder %s15, 0
    %p54 = por %p52, %p53
    %s56 = sadd.s32 %s55, 1
    %p59 = scmp.eq.s32.totalorder %s9, 1
    %p60 = scmp.ne.s32.totalorder %s55, %s57
    %p61 = scmp.eq.s32.totalorder %s9, 0
    %p62 = por %p60, %p61
    %p63 = scmp.ne.s32.totalorder %s55, %s57
    %p64 = scmp.eq.s32.totalorder %s14, 1
    %p65 = por %p63, %p64
    %p66 = scmp.ne.s32.totalorder %s57, %s58
    %p67 = scmp.eq.s32.totalorder %s14, 0
    %p68 = por %p66, %p67
    %p69 = scmp.ne.s32.totalorder %s57, %s58
    %p70 = scmp.eq.s32.totalorder %s15, 1
    %p71 = por %p69, %p70
    %p73 = scmp.ne.s32.totalorder %s58, %s72
    %p74 = scmp.eq.s32.totalorder %s15, 0
    %p75 = por %p73, %p74
    %s77 = sadd.s32 %s76, 1
    %p80 = scmp.eq.s32.totalorder %s9, 1
    %p81 = scmp.ne.s32.totalorder %s76, %s78
    %p82 = scmp.eq.s32.totalorder %s9, 0
    %p83 = por %p81, %p82
    %p84 = scmp.ne.s32.totalorder %s76, %s78
    %p85 = scmp.eq.s32.totalorder %s14, 1
    %p86 = por %p84, %p85
    %p87 = scmp.ne.s32.totalorder %s78, %s79
    %p88 = scmp.eq.s32.totalorder %s14, 0
    %p89 = por %p87, %p88
    %p90 = scmp.ne.s32.totalorder %s78, %s79
    %p91 = scmp.eq.s32.totalorder %s15, 1
    %p92 = por %p90, %p91
    %p94 = scmp.ne.s32.totalorder %s79, %s93
    %p95 = scmp.eq.s32.totalorder %s15, 0
    %p96 = por %p94, %p95
    %s97 = ssub.s32 %s16, %s28
    %p98 = scmp.eq.s32.totalorder %s97, 0
    %s100 = sadd.s32 %s99, 1
    %s101 = scalar_select %p98, %s99, %s100
    %p104 = pneg %p98
    %p105 = scmp.eq.s32.totalorder %s9, 1
    %p106 = por %p104, %p105
    %p107 = scmp.ne.s32.totalorder %s99, %s102
    %p108 = scmp.eq.s32.totalorder %s9, 0
    %p109 = por %p107, %p108
    %p110 = scmp.ne.s32.totalorder %s99, %s102
    %p111 = scmp.eq.s32.totalorder %s14, 1
    %p112 = por %p110, %p111
    %p113 = scmp.ne.s32.totalorder %s102, %s103
    %p114 = scmp.eq.s32.totalorder %s14, 0
    %p115 = por %p113, %p114
    %p116 = scmp.ne.s32.totalorder %s102, %s103
    %p117 = scmp.eq.s32.totalorder %s15, 1
    %p118 = por %p116, %p117
    %p120 = scmp.ne.s32.totalorder %s103, %s119
    %p121 = scmp.eq.s32.totalorder %s15, 0
    %p122 = por %p120, %p121
    %p123 = scmp.le.s32.totalorder 1, %s9
    %p124 = scmp.lt.s32.totalorder %s9, 3
    %p125 = pnand %p123, %p124
    %p126 = pneg %p125
    // Predicated region
    $region9: #{conv_transpose_block.2} parent=5 // pred_check
      _
    $region10: #{conv_transpose_block.2} parent=5 // pred_check_branch
      %128 = sbr.rel (%p125) target = $region12
    $region11: #{conv_transpose_block.2} parent=5 // pred_region
      %s129 = ssub.s32 %s9, 1
      // Predicated region
      $region13: #{conv_transpose_block.2} parent=11 // pred_check
        %p130 = pneg %p68
      $region14: #{conv_transpose_block.2} parent=11 // pred_check_branch
        %132 = sbr.rel (%p130) target = $region16
      $region15: #{conv_transpose_block.2} parent=11 // pred_region
        _
      $region16: #{conv_transpose_block.2} parent=11 // pred_fallthru
        _
      // Predicated region
      $region17: #{conv_transpose_block.2} parent=11 // pred_check
        %p133 = pneg %p89
      $region18: #{conv_transpose_block.2} parent=11 // pred_check_branch
        %135 = sbr.rel (%p133) target = $region20
      $region19: #{conv_transpose_block.2} parent=11 // pred_region
        _
      $region20: #{conv_transpose_block.2} parent=11 // pred_fallthru
        _
    $region12: #{conv_transpose_block.2} parent=5 // pred_fallthru
      _
    %p136 = scmp.lt.s32.totalorder %s9, 2
    // Predicated region
    $region21: #{conv_transpose_block.2} parent=5 // pred_check
      %p137 = pneg %p136
    $region22: #{conv_transpose_block.2} parent=5 // pred_check_branch
      %139 = sbr.rel (%p137) target = $region24
    $region23: #{conv_transpose_block.2} parent=5 // pred_region
      // Predicated region
      $region25: #{conv_transpose_block.2} parent=23 // pred_check
        %p140 = pneg %p41
      $region26: #{conv_transpose_block.2} parent=23 // pred_check_branch
        %142 = sbr.rel (%p140) target = $region28
      $region27: #{conv_transpose_block.2} parent=23 // pred_region
        %p143 = scmp.lt.s32.totalorder %s16, 1
        %s144 = scalar_select %p143, %s16, 1
        %s145 = smul.addr %s144, 3
        %s146 = smul.addr %s145, 2
        %s147 = scalar_lea.vmem %s0, %s146
      $region28: #{conv_transpose_block.2} parent=23 // pred_fallthru
        _
    $region24: #{conv_transpose_block.2} parent=5 // pred_fallthru
      _
    %p148 = scmp.le.s32.totalorder 1, %s9
    %p149 = scmp.lt.s32.totalorder %s9, 3
    %p150 = pnand %p148, %p149
    %p151 = pneg %p150
    // Predicated region
    $region29: #{conv_transpose_block.2} parent=5 // pred_check
      _
    $region30: #{conv_transpose_block.2} parent=5 // pred_check_branch
      %153 = sbr.rel (%p150) target = $region32
    $region31: #{conv_transpose_block.2} parent=5 // pred_region
      %s154 = ssub.s32 %s9, 1
      %p155 = scmp.lt.s32.totalorder %s18, 1
      %s156 = scalar_select %p155, %s18, 1
      %s157 = smul.addr %s156, 3
      %s158 = smul.addr %s157, 2
      %s159 = scalar_lea.vmem %s0, %s158
      %p160 = pneg %p47
      %p161 = pneg %p44
      %p162 = pneg %p68
      %p163 = pneg %p65
      %p164 = pneg %p89
      %p165 = pneg %p86
      %p166 = pneg %p115
      %p167 = pneg %p112
      %p168 = scmp.lt.s32.totalorder %s18, 1
      %s169 = scalar_select %p168, %s18, 1
      %s170 = smul.addr %s169, 8
      %s171 = scalar_lea.vmem %s3, %s170
      %p172 = scmp.lt.s32.totalorder %s18, 1
      %s173 = scalar_select %p172, %s18, 1
      %s174 = smul.addr %s173, 3
      %s175 = smul.addr %s174, 2
      %s176 = scalar_lea.vmem %s0, %s175
      %p177 = scmp.lt.s32.totalorder %s18, 1
      %s178 = scalar_select %p177, %s18, 1
      %s179 = smul.addr %s178, 8
      %s180 = scalar_lea.vmem %s3, %s179
      %v182 = vld [vmem:[%s176] sm:$0x3f]
      %184 = vst [vmem:[#allocation1] ss:$2 sm:$0xff] %v182
      %v185 = vld.sshfl [vmem:[#allocation1] sm:$0xff pattern:$0x75643120]
      %v186 = vld.sshfl [vmem:[#allocation1 + $0x8] sm:$0xff pattern:$0x75643120]
      %189 = vst [vmem:[#allocation2] sm:$0x33] %v185
      %vm190 = vcmask 254976
      %191 = vst.msk [vmem:[#allocation2 + $0x8] sm:$0x3] %vm190, %v186
      %v192 = vld [vmem:[%s176] sm:$0x3f]
      %s194 = scalar_lea.vmem [#allocation1], 1
      %195 = vst [vmem:[%s194] ss:$2 sm:$0xff] %v192
      %v196 = vld.sshfl [vmem:[#allocation1] sm:$0xff pattern:$0x75643120]
      %v198 = vld.sshfl [vmem:[#allocation1 + $0x8] sm:$0xff pattern:$0x75643120]
      %200 = vrot.lane.b32.xlu0 %v196, 127
      %v201 = vpop.permute.xlu0 %200
      %202 = vrot.lane.b32.xlu0 %v198, 127
      %v203 = vpop.permute.xlu0 %202
      %v204 = vrot.slane %v201, 4
      %v205 = vrot.slane %v203, 4
      %vm206 = vcmask 1043456
      %v207 = vsel %vm206, %v204, %v205
      %vm208 = vcmask 1039360
      %v209 = vsel %vm208, %v201, %v207
      %212 = vst [vmem:[#allocation2] sm:$0xcc] %v209
      %vm213 = vcmask 257026
      %214 = vst.msk [vmem:[#allocation2 + $0x8] sm:$0xc] %vm213, %v203
      %v215 = vld [vmem:[%s176] sm:$0x3f]
      %217 = vst [vmem:[#allocation1] ss:$2 sm:$0xff] %v215
      %v218 = vld.sshfl [vmem:[#allocation1] sm:$0xff pattern:$0x75643120]
      %v220 = vld.sshfl [vmem:[#allocation1 + $0x8] sm:$0xff pattern:$0x75643120]
      %222 = vrot.lane.b32.xlu0 %v218, 126
      %v223 = vpop.permute.xlu0 %222
      %224 = vrot.lane.b32.xlu0 %v220, 126
      %v225 = vpop.permute.xlu0 %224
      %v226 = vrot.slane %v223, 4
      %v227 = vrot.slane %v225, 4
      %v228 = vsel %vm206, %v226, %v227
      %vm229 = vcmask 1031168
      %v230 = vsel %vm229, %v223, %v228
      %233 = vst [vmem:[#allocation2 + $0xc] sm:$0x33] %v230
      %234 = vst.msk [vmem:[#allocation2 + $0x14] sm:$0x3] %vm190, %v225
      %v235 = vld [vmem:[%s176] sm:$0x3f]
      %s237 = scalar_lea.vmem [#allocation1], 1
      %238 = vst [vmem:[%s237] ss:$2 sm:$0xff] %v235
      %v239 = vld.sshfl [vmem:[#allocation1] sm:$0xff pattern:$0x75643120]
      %v241 = vld.sshfl [vmem:[#allocation1 + $0x8] sm:$0xff pattern:$0x75643120]
      %243 = vrot.lane.b32.xlu0 %v239, 110
      %v244 = vpop.permute.xlu0 %243
      %245 = vrot.lane.b32.xlu0 %v241, 110
      %v246 = vpop.permute.xlu0 %245
      %v247 = vrot.slane %v244, 4
      %v248 = vrot.slane %v246, 4
      %v249 = vsel %vm206, %v247, %v248
      %vm250 = vcmask 900096
      %v251 = vsel %vm250, %v244, %v249
      %254 = vst [vmem:[#allocation2 + $0xc] sm:$0xcc] %v251
      %255 = vst.msk [vmem:[#allocation2 + $0x14] sm:$0xc] %vm213, %v246
      %v256 = vld [vmem:[%s176] sm:$0x3f]
      %258 = vst [vmem:[#allocation1] ss:$2 sm:$0xff] %v256
      %v259 = vld.sshfl [vmem:[#allocation1] sm:$0xff pattern:$0x75643120]
      %v261 = vld.sshfl [vmem:[#allocation1 + $0x8] sm:$0xff pattern:$0x75643120]
      %263 = vrot.lane.b32.xlu0 %v259, 109
      %v264 = vpop.permute.xlu0 %263
      %265 = vrot.lane.b32.xlu0 %v261, 109
      %v266 = vpop.permute.xlu0 %265
      %v267 = vrot.slane %v264, 4
      %v268 = vrot.slane %v266, 4
      %v269 = vsel %vm206, %v267, %v268
      %vm270 = vcmask 891904
      %v271 = vsel %vm270, %v264, %v269
      %274 = vst [vmem:[#allocation2 + $0x18] sm:$0x33] %v271
      %275 = vst.msk [vmem:[#allocation2 + $0x20] sm:$0x3] %vm190, %v266
      %v276 = vld [vmem:[%s176] sm:$0x3f]
      %s278 = scalar_lea.vmem [#allocation1], 1
      %279 = vst [vmem:[%s278] ss:$2 sm:$0xff] %v276
      %v280 = vld.sshfl [vmem:[#allocation1] sm:$0xff pattern:$0x75643120]
      %v282 = vld.sshfl [vmem:[#allocation1 + $0x8] sm:$0xff pattern:$0x75643120]
      %284 = vrot.lane.b32.xlu0 %v280, 108
      %v285 = vpop.permute.xlu0 %284
      %286 = vrot.lane.b32.xlu0 %v282, 108
      %v287 = vpop.permute.xlu0 %286
      %v288 = vrot.slane %v285, 4
      %v289 = vrot.slane %v287, 4
      %v290 = vsel %vm206, %v288, %v289
      %vm291 = vcmask 883712
      %v292 = vsel %vm291, %v285, %v290
      %295 = vst [vmem:[#allocation2 + $0x18] sm:$0xcc] %v292
      %296 = vst.msk [vmem:[#allocation2 + $0x20] sm:$0xc] %vm213, %v287
      %v297 = vld [vmem:[%s176] sm:$0x3f]
      %299 = vst [vmem:[#allocation1] ss:$2 sm:$0xff] %v297
      %v300 = vld.sshfl [vmem:[#allocation1] sm:$0xff pattern:$0x75643120]
      %v302 = vld.sshfl [vmem:[#allocation1 + $0x8] sm:$0xff pattern:$0x75643120]
      %304 = vrot.lane.b32.xlu0 %v300, 92
      %v305 = vpop.permute.xlu0 %304
      %306 = vrot.lane.b32.xlu0 %v302, 92
      %v307 = vpop.permute.xlu0 %306
      %v308 = vrot.slane %v305, 4
      %v309 = vrot.slane %v307, 4
      %v310 = vsel %vm206, %v308, %v309
      %vm311 = vcmask 752640
      %v312 = vsel %vm311, %v305, %v310
      %315 = vst [vmem:[#allocation2 + $0x24] sm:$0x33] %v312
      %316 = vst.msk [vmem:[#allocation2 + $0x2c] sm:$0x3] %vm190, %v307
      %v317 = vld [vmem:[%s176] sm:$0x3f]
      %s319 = scalar_lea.vmem [#allocation1], 1
      %320 = vst [vmem:[%s319] ss:$2 sm:$0xff] %v317
      %v321 = vld.sshfl [vmem:[#allocation1] sm:$0xff pattern:$0x75643120]
      %v323 = vld.sshfl [vmem:[#allocation1 + $0x8] sm:$0xff pattern:$0x75643120]
      %325 = vrot.lane.b32.xlu0 %v321, 91
      %v326 = vpop.permute.xlu0 %325
      %327 = vrot.lane.b32.xlu0 %v323, 91
      %v328 = vpop.permute.xlu0 %327
      %v329 = vrot.slane %v326, 4
      %v330 = vrot.slane %v328, 4
      %v331 = vsel %vm206, %v329, %v330
      %vm332 = vcmask 744448
      %v333 = vsel %vm332, %v326, %v331
      %336 = vst [vmem:[#allocation2 + $0x24] sm:$0xcc] %v333
      %337 = vst.msk [vmem:[#allocation2 + $0x2c] sm:$0xc] %vm213, %v328
      %v338 = vld [vmem:[%s176] sm:$0x3f]
      %340 = vst [vmem:[#allocation1] ss:$2 sm:$0xff] %v338
      %v341 = vld.sshfl [vmem:[#allocation1] sm:$0xff pattern:$0x75643120]
      %v343 = vld.sshfl [vmem:[#allocation1 + $0x8] sm:$0xff pattern:$0x75643120]
      %345 = vrot.lane.b32.xlu0 %v341, 90
      %v346 = vpop.permute.xlu0 %345
      %347 = vrot.lane.b32.xlu0 %v343, 90
      %v348 = vpop.permute.xlu0 %347
      %v349 = vrot.slane %v346, 4
      %v350 = vrot.slane %v348, 4
      %v351 = vsel %vm206, %v349, %v350
      %vm352 = vcmask 736256
      %v353 = vsel %vm352, %v346, %v351
      %356 = vst [vmem:[#allocation2 + $0x30] sm:$0x33] %v353
      %357 = vst.msk [vmem:[#allocation2 + $0x38] sm:$0x3] %vm190, %v348
      %v358 = vld [vmem:[%s1] sm:$0xf]
      %v359 = vld [vmem:[#allocation2] sm:$0xff]
      %v360 = vld [vmem:[#allocation2 + $0x8] sm:$0xf]
      %v361 = vld [vmem:[#allocation2 + $0xc] sm:$0xff]
      %v362 = vld [vmem:[#allocation2 + $0x14] sm:$0xf]
      %v363 = vld [vmem:[#allocation2 + $0x18] sm:$0xff]
      %v364 = vld [vmem:[#allocation2 + $0x20] sm:$0xf]
      %v365 = vld [vmem:[#allocation2 + $0x24] sm:$0xff]
      %v366 = vld [vmem:[#allocation2 + $0x2c] sm:$0xf]
      %v367 = vld [vmem:[#allocation2 + $0x30] sm:$0x33]
      %v368 = vld [vmem:[#allocation2 + $0x38] sm:$0x3]
      %v379 = vunpack.c.l.b16 %v359
      %v380 = vunpack.c.h.b16 %v359
      %v381 = vunpack.c.l.b16 %v360
      %v382 = vunpack.c.l.b16 %v361
      %v383 = vunpack.c.h.b16 %v361
      %v384 = vunpack.c.l.b16 %v362
      %v385 = vunpack.c.l.b16 %v363
      %v386 = vunpack.c.h.b16 %v363
      %v387 = vunpack.c.l.b16 %v364
      %v388 = vunpack.c.l.b16 %v365
      %v389 = vunpack.c.h.b16 %v365
      %v390 = vunpack.c.l.b16 %v366
      %v391 = vunpack.c.l.b16 %v367
      %v392 = vunpack.c.h.b16 %v367
      %v393 = vunpack.c.l.b16 %v368
      %v394 = vpack.c.b16 %v382, %v379
      %v395 = vpack.c.b16 %v383, %v380
      %v396 = vpack.c.b16 %v384, %v381
      %v397 = vpack.c.b16 %v388, %v385
      %v398 = vpack.c.b16 %v389, %v386
      %v399 = vpack.c.b16 %v390, %v387
      %v400 = vpack.c.b16 %v391, %v391
      %v401 = vpack.c.b16 %v392, %v392
      %v402 = vpack.c.b16 %v393, %v393
      %vm409 = vcmask 293888
      %v411 = vsel %vm409, %v358, 0
      %vm413 = vcmask 1041408
      %v415 = vsel %vm413, %v400, 0
      %v418 = vsel %vm413, %v401, 0
      %v421 = vsel %vm413, %v402, 0
      %423 = vmatpush.bf16.msra.mxu0 0
      %424 = vmatpush.bf16.msra.mxu0 0
      %425 = vmatpush.bf16.msra.mxu0 0
      %426 = vmatpush.bf16.msra.mxu0 0
      %427 = vmatpush.bf16.msra.mxu0 0
      %428 = vmatpush.bf16.msra.mxu0 %v415
      %429 = vmatpush.bf16.msra.mxu0 %v397
      %430 = vmatpush.bf16.msra.mxu0 %v394
      %431 = vmatmul.bf16.gmra.mxu0 %v411
      %v432 = vpop.f32.mrf.mxu0
      %v433 = vadd.f32 0.0, %v432
      %v434 = vpop.f32.mrf.mxu0
      %435 = vdwg.mxu0
      %436 = vmatpush.bf16.msra.mxu0 0
      %437 = vmatpush.bf16.msra.mxu0 0
      %438 = vmatpush.bf16.msra.mxu0 0
      %439 = vmatpush.bf16.msra.mxu0 0
      %440 = vmatpush.bf16.msra.mxu0 0
      %441 = vmatpush.bf16.msra.mxu0 %v418
      %442 = vmatpush.bf16.msra.mxu0 %v398
      %443 = vmatpush.bf16.msra.mxu0 %v395
      %444 = vmatmul.bf16.gmra.mxu0 %v411
      %v445 = vpop.f32.mrf.mxu0
      %v446 = vadd.f32 0.0, %v445
      %v447 = vpop.f32.mrf.mxu0
      %448 = vdwg.mxu0
      %449 = vmatpush.bf16.msra.mxu0 0
      %450 = vmatpush.bf16.msra.mxu0 0
      %451 = vmatpush.bf16.msra.mxu0 0
      %452 = vmatpush.bf16.msra.mxu0 0
      %453 = vmatpush.bf16.msra.mxu0 0
      %454 = vmatpush.bf16.msra.mxu0 %v421
      %455 = vmatpush.bf16.msra.mxu0 %v399
      %456 = vmatpush.bf16.msra.mxu0 %v396
      %457 = vmatmul.bf16.gmra.mxu0 %v411
      %v458 = vpop.f32.mrf.mxu0
      %v459 = vadd.f32 0.0, %v458
      %v460 = vpop.f32.mrf.mxu0
      %461 = vdwg.mxu0
      %v462 = vld [vmem:[%s2] sm:$0x7]
      %v464 = vperm.slane %v462, 0
      %v465 = vperm.slane %v462, 1
      %v466 = vperm.slane %v462, 2
      %v470 = vmul.f32 %v433, %v464
      %v471 = vmul.f32 %v446, %v465
      %v472 = vmul.f32 %v459, %v466
      %v473 = vadd.f32 %v470, %v471
      %vm474 = vcmask 261120
      %v475 = vsel %vm474, %v472, 0.0
      %v476 = vadd.f32 %v473, %v475
      %477 = vadd.xlane.f32.xlu0 %v476
      %v478 = vpop.xlane.xlu0 %477
      %v479 = vmul.f32 %v478, 0.00390625
      %v480 = vsub.f32 %v433, %v479
      %v481 = vsub.f32 %v446, %v479
      %v482 = vsub.f32 %v459, %v479
      %v483 = vmul.f32 %v480, %v464
      %v484 = vmul.f32 %v481, %v465
      %v485 = vmul.f32 %v482, %v466
      %v486 = vmul.f32 %v483, %v483
      %v487 = vmul.f32 %v484, %v484
      %v488 = vmul.f32 %v485, %v485
      %v489 = vadd.f32 %v486, %v487
      %v490 = vsel %vm474, %v488, 0.0
      %v491 = vadd.f32 %v489, %v490
      %492 = vadd.xlane.f32.xlu0 %v491
      %v493 = vpop.xlane.xlu0 %492
      %p494 = scmp.eq.s32.totalorder %s19, 0
      // Predicated region
      $region33: #{conv_transpose_block.2} parent=31 // pred_check
        %p495 = pneg %p494
      $region34: #{conv_transpose_block.2} parent=31 // pred_check_branch
        %497 = sbr.rel (%p495) target = $region36
      $region35: #{conv_transpose_block.2} parent=31 // pred_region
        %vm498 = vcmask 7168
        %v499 = vsel %vm498, %v478, %v493
        %vm500 = vcmask 15360
        %501 = vst.msk [vmem:[%s180] sm:$0xff] %vm500, %v499
      $region36: #{conv_transpose_block.2} parent=31 // pred_fallthru
        _
      %p502 = scmp.ne.s32.totalorder %s19, 0
      // Predicated region
      $region37: #{conv_transpose_block.2} parent=31 // pred_check
        %p503 = pneg %p502
      $region38: #{conv_transpose_block.2} parent=31 // pred_check_branch
        %505 = sbr.rel (%p503) target = $region40
      $region39: #{conv_transpose_block.2} parent=31 // pred_region
        %v506 = vld [vmem:[%s180] sm:$0xff]
        %s507 = scvt.s32.f32 %s19
        %s508 = smul.f32 %s507, 256.0
        %v509 = vstv %s508
        %v510 = vrcp.pop %v509
        %v511 = vmul.f32 %v509, %v510
        %v512 = vsub.f32 1.0, %v511
        %v513 = vmul.f32 %v510, %v512
        %v514 = vadd.f32 %v510, %v513
        %vm515 = vweird.f32 %v509
        %vm516 = vweird.f32 %v510
        %vm517 = vmor %vm515, %vm516
        %v518 = vsel %vm517, %v510, %v514
        %v519 = vand.u32 2147483647, %v509
        %vm520 = vcmp.eq.f32.partialorder %v519, 8.507059e+37
        %v521 = vand.u32 %v509, 2147483648
        %v522 = vor.u32 1.1754944e-38, %v521
        %v523 = vsel %vm520, %v522, %v518
        %v524 = vmul.f32 %v506, %v523
        %v525 = vsub.f32 %v479, %v524
        %v526 = vmul.f32 %v525, %v525
        %s527 = smul.f32 %s508, 256.0
        %s528 = sadd.f32 %s508, 256.0
        %v529 = vstv %s528
        %v530 = vrcp.pop %v529
        %v531 = vmul.f32 %v529, %v530
        %v532 = vsub.f32 1.0, %v531
        %v533 = vmul.f32 %v530, %v532
        %v534 = vadd.f32 %v530, %v533
        %vm535 = vweird.f32 %v529
        %vm536 = vweird.f32 %v530
        %vm537 = vmor %vm535, %vm536
        %v538 = vsel %vm537, %v530, %v534
        %v539 = vand.u32 2147483647, %v529
        %vm540 = vcmp.eq.f32.partialorder %v539, 8.507059e+37
        %v541 = vand.u32 %v529, 2147483648
        %v542 = vor.u32 1.1754944e-38, %v541
        %v543 = vsel %vm540, %v542, %v538
        %s544 = vtos %v543
        %s545 = smul.f32 %s527, %s544
        %v546 = vstv %s545
        %v547 = vmul.f32 %v526, %v546
        %v548 = vadd.f32 %v506, %v478
        %v549 = vadd.f32 %v506, %v493
        %551 = vrot.lane.b32.xlu0 %v547, 1
        %v552 = vpop.permute.xlu0 %551
        %v554 = vadd.f32 %v549, %v552
        %vm555 = vcmask 7168
        %v556 = vsel %vm555, %v548, %v554
        %vm557 = vcmask 15360
        %558 = vst.msk [vmem:[%s180] sm:$0xff] %vm557, %v556
      $region40: #{conv_transpose_block.2} parent=31 // pred_fallthru
        _
      %p559 = scmp.lt.s32.totalorder %s18, 1
      %s560 = scalar_select %p559, %s18, 1
      %s561 = smul.addr %s560, 8
      %s562 = scalar_lea.vmem %s3, %s561
      // Predicated region
      $region41: #{conv_transpose_block.2} parent=31 // pred_check
        %p563 = pneg %p112
      $region42: #{conv_transpose_block.2} parent=31 // pred_check_branch
        %565 = sbr.rel (%p563) target = $region44
      $region43: #{conv_transpose_block.2} parent=31 // pred_region
        _
      $region44: #{conv_transpose_block.2} parent=31 // pred_fallthru
        _
    $region32: #{conv_transpose_block.2} parent=5 // pred_fallthru
      _
    %p566 = scmp.le.s32.totalorder 2, %s9
    // Predicated region
    $region45: #{conv_transpose_block.2} parent=5 // pred_check
      %p567 = pneg %p566
    $region46: #{conv_transpose_block.2} parent=5 // pred_check_branch
      %569 = sbr.rel (%p567) target = $region48
    $region47: #{conv_transpose_block.2} parent=5 // pred_region
      %s570 = ssub.s32 %s9, 2
      // Predicated region
      $region49: #{conv_transpose_block.2} parent=47 // pred_check
        %p571 = pneg %p118
      $region50: #{conv_transpose_block.2} parent=47 // pred_check_branch
        %573 = sbr.rel (%p571) target = $region52
      $region51: #{conv_transpose_block.2} parent=47 // pred_region
        %p574 = scmp.lt.s32.totalorder %s20, 1
        %s575 = scalar_select %p574, %s20, 1
        %s576 = smul.addr %s575, 8
        %s577 = scalar_lea.vmem %s3, %s576
      $region52: #{conv_transpose_block.2} parent=47 // pred_fallthru
        _
    $region48: #{conv_transpose_block.2} parent=5 // pred_fallthru
      _
  $region6: #{conv_transpose_block.2} parent=0 // loop_footer
    %s13 = sadd.s32 1, %s9
  $region7: #{conv_transpose_block.2} parent=0 // loop_footer_branch
    %8 = sbr.rel target = $region3
  $region8: #{conv_transpose_block.2} parent=0 // loop_exit
    _

// kernel: conv_transpose_block.3
$region0: #{conv_transpose_block.3}
  #allocation0 [shape = 'u32[]', space=smem, size = 0x4, offset = 0x4, fixed_abs, tag = 'smem constant byte address 0x4 - core index']
  #allocation1 [shape = 'u32[72,128]{1,0:T(1,128)}', space=vmem, size = 0x9000, scoped, tag = 'internal scratch']
  #allocation2 [shape = 'bf16[36,288]{1,0:T(8,128)(2,1)}', space=vmem, size = 0x7800, scoped, tag = 'scratch operand']
  %s0 = inlined_call_operand.vmem [shape: bf16[2,4,326], index: 0, kind: input, shape index: {}]
  %s1 = inlined_call_operand.vmem [shape: bf16[8,36], index: 1, kind: input, shape index: {}]
  %s2 = inlined_call_operand.vmem [shape: f32[8,1], index: 2, kind: input, shape index: {}]
  %s3 = inlined_call_operand.vmem [shape: f32[8,1], index: 3, kind: input, shape index: {}]
  %s4 = inlined_call_operand.vmem [shape: f32[2,8,288], index: 4, kind: output, shape index: {}]
  %s5 = sld [smem:[#allocation0]]
  $region49: #{conv_transpose_block.3} parent=0
    _
  %s7 = ssub.s32 1, %s5
  %s8 = scalar_select 0, %s7, %s5
  loop: start=0, step=1, limit=4
  $region2: #{conv_transpose_block.3} parent=0 // loop_pre_header
    _
  $region3: #{conv_transpose_block.3} parent=0 // loop_header
    %s10 = sphi 0, %s14
    %p11 = scmp.ge.s32.totalorder %s10, 4
    %s17 = sphi 0, %s29
    %s18 = sphi 0, %s25
    %s19 = sphi 0, %s17
    %s20 = sphi 0, %s18
    %s21 = sphi 0, %s19
    %s22 = sphi 0, %s20
    %s32 = sphi 0, %s34
    %s35 = sphi 0, %s32
    %s36 = sphi 0, %s35
    %s52 = sphi 0, %s36
    %s56 = sphi 0, %s56
    %s58 = sphi 0, %s56
    %s59 = sphi 0, %s58
    %s73 = sphi 0, %s59
    %s77 = sphi 0, %s77
    %s79 = sphi 0, %s77
    %s80 = sphi 0, %s79
    %s94 = sphi 0, %s80
    %s98 = sphi 0, %s98
    %s100 = sphi 0, %s98
    %s101 = sphi 0, %s100
    %s115 = sphi 0, %s101
    %s123 = sphi 0, %s125
    %s126 = sphi 0, %s123
    %s127 = sphi 0, %s126
    %s143 = sphi 0, %s127
  $region4: #{conv_transpose_block.3} parent=0 // loop_header_branch
    %13 = sbr.rel (%p11) target = $region8
  $region5: #{conv_transpose_block.3} parent=0 // loop_body
    %s15 = ssub.s32 %s10, 1
    %s16 = ssub.s32 %s10, 2
    %s23 = sadd.s32 1, %s18
    %p24 = scmp.ge.s32.totalorder %s23, 1
    %s25 = scalar_select %p24, 0, %s23
    %s26 = sadd.s32 1, %s17
    %s27 = scalar_select %p24, %s26, %s17
    %p28 = scmp.ge.s32.totalorder %s27, 2
    %s29 = scalar_select %p28, 0, %s27
    %s30 = ssub.s32 %s17, %s29
    %p31 = scmp.eq.s32.totalorder %s30, 0
    %s33 = sadd.s32 %s32, 1
    %s34 = scalar_select %p31, %s32, %s33
    %p37 = pneg %p31
    %p38 = scmp.eq.s32.totalorder %s10, 1
    %p39 = por %p37, %p38
    %p40 = scmp.ne.s32.totalorder %s32, %s35
    %p41 = scmp.eq.s32.totalorder %s10, 0
    %p42 = por %p40, %p41
    %p43 = scmp.ne.s32.totalorder %s32, %s35
    %p44 = scmp.eq.s32.totalorder %s15, 1
    %p45 = por %p43, %p44
    %p46 = scmp.ne.s32.totalorder %s35, %s36
    %p47 = scmp.eq.s32.totalorder %s15, 0
    %p48 = por %p46, %p47
    %p49 = scmp.ne.s32.totalorder %s35, %s36
    %p50 = scmp.eq.s32.totalorder %s16, 1
    %p51 = por %p49, %p50
    %p53 = scmp.ne.s32.totalorder %s36, %s52
    %p54 = scmp.eq.s32.totalorder %s16, 0
    %p55 = por %p53, %p54
    %s57 = sadd.s32 %s56, 1
    %p60 = scmp.eq.s32.totalorder %s10, 1
    %p61 = scmp.ne.s32.totalorder %s56, %s58
    %p62 = scmp.eq.s32.totalorder %s10, 0
    %p63 = por %p61, %p62
    %p64 = scmp.ne.s32.totalorder %s56, %s58
    %p65 = scmp.eq.s32.totalorder %s15, 1
    %p66 = por %p64, %p65
    %p67 = scmp.ne.s32.totalorder %s58, %s59
    %p68 = scmp.eq.s32.totalorder %s15, 0
    %p69 = por %p67, %p68
    %p70 = scmp.ne.s32.totalorder %s58, %s59
    %p71 = scmp.eq.s32.totalorder %s16, 1
    %p72 = por %p70, %p71
    %p74 = scmp.ne.s32.totalorder %s59, %s73
    %p75 = scmp.eq.s32.totalorder %s16, 0
    %p76 = por %p74, %p75
    %s78 = sadd.s32 %s77, 1
    %p81 = scmp.eq.s32.totalorder %s10, 1
    %p82 = scmp.ne.s32.totalorder %s77, %s79
    %p83 = scmp.eq.s32.totalorder %s10, 0
    %p84 = por %p82, %p83
    %p85 = scmp.ne.s32.totalorder %s77, %s79
    %p86 = scmp.eq.s32.totalorder %s15, 1
    %p87 = por %p85, %p86
    %p88 = scmp.ne.s32.totalorder %s79, %s80
    %p89 = scmp.eq.s32.totalorder %s15, 0
    %p90 = por %p88, %p89
    %p91 = scmp.ne.s32.totalorder %s79, %s80
    %p92 = scmp.eq.s32.totalorder %s16, 1
    %p93 = por %p91, %p92
    %p95 = scmp.ne.s32.totalorder %s80, %s94
    %p96 = scmp.eq.s32.totalorder %s16, 0
    %p97 = por %p95, %p96
    %s99 = sadd.s32 %s98, 1
    %p102 = scmp.eq.s32.totalorder %s10, 1
    %p103 = scmp.ne.s32.totalorder %s98, %s100
    %p104 = scmp.eq.s32.totalorder %s10, 0
    %p105 = por %p103, %p104
    %p106 = scmp.ne.s32.totalorder %s98, %s100
    %p107 = scmp.eq.s32.totalorder %s15, 1
    %p108 = por %p106, %p107
    %p109 = scmp.ne.s32.totalorder %s100, %s101
    %p110 = scmp.eq.s32.totalorder %s15, 0
    %p111 = por %p109, %p110
    %p112 = scmp.ne.s32.totalorder %s100, %s101
    %p113 = scmp.eq.s32.totalorder %s16, 1
    %p114 = por %p112, %p113
    %p116 = scmp.ne.s32.totalorder %s101, %s115
    %p117 = scmp.eq.s32.totalorder %s16, 0
    %p118 = por %p116, %p117
    %s119 = ssub.s32 %s17, %s29
    %s120 = ssub.s32 %s18, %s25
    %s121 = sor.u32 %s119, %s120
    %p122 = scmp.eq.s32.totalorder %s121, 0
    %s124 = sadd.s32 %s123, 1
    %s125 = scalar_select %p122, %s123, %s124
    %p128 = pneg %p122
    %p129 = scmp.eq.s32.totalorder %s10, 1
    %p130 = por %p128, %p129
    %p131 = scmp.ne.s32.totalorder %s123, %s126
    %p132 = scmp.eq.s32.totalorder %s10, 0
    %p133 = por %p131, %p132
    %p134 = scmp.ne.s32.totalorder %s123, %s126
    %p135 = scmp.eq.s32.totalorder %s15, 1
    %p136 = por %p134, %p135
    %p137 = scmp.ne.s32.totalorder %s126, %s127
    %p138 = scmp.eq.s32.totalorder %s15, 0
    %p139 = por %p137, %p138
    %p140 = scmp.ne.s32.totalorder %s126, %s127
    %p141 = scmp.eq.s32.totalorder %s16, 1
    %p142 = por %p140, %p141
    %p144 = scmp.ne.s32.totalorder %s127, %s143
    %p145 = scmp.eq.s32.totalorder %s16, 0
    %p146 = por %p144, %p145
    %p147 = scmp.le.s32.totalorder 1, %s10
    %p148 = scmp.lt.s32.totalorder %s10, 3
    %p149 = pnand %p147, %p148
    %p150 = pneg %p149
    // Predicated region
    $region9: #{conv_transpose_block.3} parent=5 // pred_check
      _
    $region10: #{conv_transpose_block.3} parent=5 // pred_check_branch
      %152 = sbr.rel (%p149) target = $region12
    $region11: #{conv_transpose_block.3} parent=5 // pred_region
      %s153 = ssub.s32 %s10, 1
      // Predicated region
      $region13: #{conv_transpose_block.3} parent=11 // pred_check
        %p154 = pneg %p69
      $region14: #{conv_transpose_block.3} parent=11 // pred_check_branch
        %156 = sbr.rel (%p154) target = $region16
      $region15: #{conv_transpose_block.3} parent=11 // pred_region
        _
      $region16: #{conv_transpose_block.3} parent=11 // pred_fallthru
        _
      // Predicated region
      $region17: #{conv_transpose_block.3} parent=11 // pred_check
        %p157 = pneg %p90
      $region18: #{conv_transpose_block.3} parent=11 // pred_check_branch
        %159 = sbr.rel (%p157) target = $region20
      $region19: #{conv_transpose_block.3} parent=11 // pred_region
        _
      $region20: #{conv_transpose_block.3} parent=11 // pred_fallthru
        _
      // Predicated region
      $region21: #{conv_transpose_block.3} parent=11 // pred_check
        %p160 = pneg %p111
      $region22: #{conv_transpose_block.3} parent=11 // pred_check_branch
        %162 = sbr.rel (%p160) target = $region24
      $region23: #{conv_transpose_block.3} parent=11 // pred_region
        _
      $region24: #{conv_transpose_block.3} parent=11 // pred_fallthru
        _
    $region12: #{conv_transpose_block.3} parent=5 // pred_fallthru
      _
    %p163 = scmp.lt.s32.totalorder %s10, 2
    // Predicated region
    $region25: #{conv_transpose_block.3} parent=5 // pred_check
      %p164 = pneg %p163
    $region26: #{conv_transpose_block.3} parent=5 // pred_check_branch
      %166 = sbr.rel (%p164) target = $region28
    $region27: #{conv_transpose_block.3} parent=5 // pred_region
      // Predicated region
      $region29: #{conv_transpose_block.3} parent=27 // pred_check
        %p167 = pneg %p42
      $region30: #{conv_transpose_block.3} parent=27 // pred_check_branch
        %169 = sbr.rel (%p167) target = $region32
      $region31: #{conv_transpose_block.3} parent=27 // pred_region
        %p170 = scmp.lt.s32.totalorder %s17, 1
        %s171 = scalar_select %p170, %s17, 1
        %s172 = smul.addr %s171, 3
        %s173 = smul.addr %s172, 2
        %s174 = scalar_lea.vmem %s0, %s173
      $region32: #{conv_transpose_block.3} parent=27 // pred_fallthru
        _
    $region28: #{conv_transpose_block.3} parent=5 // pred_fallthru
      _
    %p175 = scmp.le.s32.totalorder 1, %s10
    %p176 = scmp.lt.s32.totalorder %s10, 3
    %p177 = pnand %p175, %p176
    %p178 = pneg %p177
    // Predicated region
    $region33: #{conv_transpose_block.3} parent=5 // pred_check
      _
    $region34: #{conv_transpose_block.3} parent=5 // pred_check_branch
      %180 = sbr.rel (%p177) target = $region36
    $region35: #{conv_transpose_block.3} parent=5 // pred_region
      %s181 = ssub.s32 %s10, 1
      %p182 = scmp.lt.s32.totalorder %s19, 1
      %s183 = scalar_select %p182, %s19, 1
      %s184 = smul.addr %s183, 3
      %s185 = smul.addr %s184, 2
      %s186 = scalar_lea.vmem %s0, %s185
      %p187 = pneg %p48
      %p188 = pneg %p45
      %p189 = pneg %p69
      %p190 = pneg %p66
      %p191 = pneg %p90
      %p192 = pneg %p87
      %p193 = pneg %p111
      %p194 = pneg %p108
      %p195 = pneg %p139
      %p196 = pneg %p136
      %s197 = smul.u32 3, %s20
      %p198 = scmp.lt.s32.totalorder %s19, 1
      %s199 = scalar_select %p198, %s19, 1
      %p200 = scmp.lt.s32.totalorder %s197, 2
      %s201 = scalar_select %p200, %s197, 2
      %s202 = smul.addr %s199, 3
      %s203 = sadd.s32 %s201, %s202
      %s204 = smul.addr %s203, 8
      %s205 = scalar_lea.vmem %s4, %s204
      %p206 = scmp.lt.s32.totalorder %s19, 1
      %s207 = scalar_select %p206, %s19, 1
      %s208 = smul.addr %s207, 3
      %s209 = smul.addr %s208, 2
      %s210 = scalar_lea.vmem %s0, %s209
      %s211 = smul.u32 3, %s20
      %p212 = scmp.lt.s32.totalorder %s19, 1
      %s213 = scalar_select %p212, %s19, 1
      %p214 = scmp.lt.s32.totalorder %s211, 2
      %s215 = scalar_select %p214, %s211, 2
      %s216 = smul.addr %s213, 3
      %s217 = sadd.s32 %s215, %s216
      %s218 = smul.addr %s217, 8
      %s219 = scalar_lea.vmem %s4, %s218
      %s220 = smul.u32 3, %s20
      %v222 = vld [vmem:[%s210] sm:$0x3f]
      %224 = vst [vmem:[#allocation1] ss:$2 sm:$0xff] %v222
      %v225 = vld.sshfl [vmem:[#allocation1] sm:$0xff pattern:$0x75643120]
      %v226 = vld.sshfl [vmem:[#allocation1 + $0x8] sm:$0xff pattern:$0x75643120]
      %229 = vst [vmem:[#allocation2] sm:$0x33] %v225
      %vm230 = vcmask 254976
      %231 = vst.msk [vmem:[#allocation2 + $0x8] sm:$0x3] %vm230, %v226
      %v232 = vld [vmem:[%s210] sm:$0x3f]
      %s234 = scalar_lea.vmem [#allocation1], 1
      %235 = vst [vmem:[%s234] ss:$2 sm:$0xff] %v232
      %v236 = vld.sshfl [vmem:[#allocation1] sm:$0xff pattern:$0x75643120]
      %v238 = vld.sshfl [vmem:[#allocation1 + $0x8] sm:$0xff pattern:$0x75643120]
      %240 = vrot.lane.b32.xlu0 %v236, 127
      %v241 = vpop.permute.xlu0 %240
      %242 = vrot.lane.b32.xlu0 %v238, 127
      %v243 = vpop.permute.xlu0 %242
      %v244 = vrot.slane %v241, 4
      %v245 = vrot.slane %v243, 4
      %vm246 = vcmask 1043456
      %v247 = vsel %vm246, %v244, %v245
      %vm248 = vcmask 1039360
      %v249 = vsel %vm248, %v241, %v247
      %252 = vst [vmem:[#allocation2] sm:$0xcc] %v249
      %vm253 = vcmask 257026
      %254 = vst.msk [vmem:[#allocation2 + $0x8] sm:$0xc] %vm253, %v243
      %v255 = vld [vmem:[%s210] sm:$0x3f]
      %257 = vst [vmem:[#allocation1] ss:$2 sm:$0xff] %v255
      %v258 = vld.sshfl [vmem:[#allocation1] sm:$0xff pattern:$0x75643120]
      %v260 = vld.sshfl [vmem:[#allocation1 + $0x8] sm:$0xff pattern:$0x75643120]
      %262 = vrot.lane.b32.xlu0 %v258, 126
      %v263 = vpop.permute.xlu0 %262
      %264 = vrot.lane.b32.xlu0 %v260, 126
      %v265 = vpop.permute.xlu0 %264
      %v266 = vrot.slane %v263, 4
      %v267 = vrot.slane %v265, 4
      %v268 = vsel %vm246, %v266, %v267
      %vm269 = vcmask 1031168
      %v270 = vsel %vm269, %v263, %v268
      %273 = vst [vmem:[#allocation2 + $0xc] sm:$0x33] %v270
      %274 = vst.msk [vmem:[#allocation2 + $0x14] sm:$0x3] %vm230, %v265
      %v275 = vld [vmem:[%s210] sm:$0x3f]
      %s277 = scalar_lea.vmem [#allocation1], 1
      %278 = vst [vmem:[%s277] ss:$2 sm:$0xff] %v275
      %v279 = vld.sshfl [vmem:[#allocation1] sm:$0xff pattern:$0x75643120]
      %v281 = vld.sshfl [vmem:[#allocation1 + $0x8] sm:$0xff pattern:$0x75643120]
      %283 = vrot.lane.b32.xlu0 %v279, 110
      %v284 = vpop.permute.xlu0 %283
      %285 = vrot.lane.b32.xlu0 %v281, 110
      %v286 = vpop.permute.xlu0 %285
      %v287 = vrot.slane %v284, 4
      %v288 = vrot.slane %v286, 4
      %v289 = vsel %vm246, %v287, %v288
      %vm290 = vcmask 900096
      %v291 = vsel %vm290, %v284, %v289
      %294 = vst [vmem:[#allocation2 + $0xc] sm:$0xcc] %v291
      %295 = vst.msk [vmem:[#allocation2 + $0x14] sm:$0xc] %vm253, %v286
      %v296 = vld [vmem:[%s210] sm:$0x3f]
      %298 = vst [vmem:[#allocation1] ss:$2 sm:$0xff] %v296
      %v299 = vld.sshfl [vmem:[#allocation1] sm:$0xff pattern:$0x75643120]
      %v301 = vld.sshfl [vmem:[#allocation1 + $0x8] sm:$0xff pattern:$0x75643120]
      %303 = vrot.lane.b32.xlu0 %v299, 109
      %v304 = vpop.permute.xlu0 %303
      %305 = vrot.lane.b32.xlu0 %v301, 109
      %v306 = vpop.permute.xlu0 %305
      %v307 = vrot.slane %v304, 4
      %v308 = vrot.slane %v306, 4
      %v309 = vsel %vm246, %v307, %v308
      %vm310 = vcmask 891904
      %v311 = vsel %vm310, %v304, %v309
      %314 = vst [vmem:[#allocation2 + $0x18] sm:$0x33] %v311
      %315 = vst.msk [vmem:[#allocation2 + $0x20] sm:$0x3] %vm230, %v306
      %v316 = vld [vmem:[%s210] sm:$0x3f]
      %s318 = scalar_lea.vmem [#allocation1], 1
      %319 = vst [vmem:[%s318] ss:$2 sm:$0xff] %v316
      %v320 = vld.sshfl [vmem:[#allocation1] sm:$0xff pattern:$0x75643120]
      %v322 = vld.sshfl [vmem:[#allocation1 + $0x8] sm:$0xff pattern:$0x75643120]
      %324 = vrot.lane.b32.xlu0 %v320, 108
      %v325 = vpop.permute.xlu0 %324
      %326 = vrot.lane.b32.xlu0 %v322, 108
      %v327 = vpop.permute.xlu0 %326
      %v328 = vrot.slane %v325, 4
      %v329 = vrot.slane %v327, 4
      %v330 = vsel %vm246, %v328, %v329
      %vm331 = vcmask 883712
      %v332 = vsel %vm331, %v325, %v330
      %335 = vst [vmem:[#allocation2 + $0x18] sm:$0xcc] %v332
      %336 = vst.msk [vmem:[#allocation2 + $0x20] sm:$0xc] %vm253, %v327
      %v337 = vld [vmem:[%s210] sm:$0x3f]
      %339 = vst [vmem:[#allocation1] ss:$2 sm:$0xff] %v337
      %v340 = vld.sshfl [vmem:[#allocation1] sm:$0xff pattern:$0x75643120]
      %v342 = vld.sshfl [vmem:[#allocation1 + $0x8] sm:$0xff pattern:$0x75643120]
      %344 = vrot.lane.b32.xlu0 %v340, 92
      %v345 = vpop.permute.xlu0 %344
      %346 = vrot.lane.b32.xlu0 %v342, 92
      %v347 = vpop.permute.xlu0 %346
      %v348 = vrot.slane %v345, 4
      %v349 = vrot.slane %v347, 4
      %v350 = vsel %vm246, %v348, %v349
      %vm351 = vcmask 752640
      %v352 = vsel %vm351, %v345, %v350
      %355 = vst [vmem:[#allocation2 + $0x24] sm:$0x33] %v352
      %356 = vst.msk [vmem:[#allocation2 + $0x2c] sm:$0x3] %vm230, %v347
      %v357 = vld [vmem:[%s210] sm:$0x3f]
      %s359 = scalar_lea.vmem [#allocation1], 1
      %360 = vst [vmem:[%s359] ss:$2 sm:$0xff] %v357
      %v361 = vld.sshfl [vmem:[#allocation1] sm:$0xff pattern:$0x75643120]
      %v363 = vld.sshfl [vmem:[#allocation1 + $0x8] sm:$0xff pattern:$0x75643120]
      %365 = vrot.lane.b32.xlu0 %v361, 91
      %v366 = vpop.permute.xlu0 %365
      %367 = vrot.lane.b32.xlu0 %v363, 91
      %v368 = vpop.permute.xlu0 %367
      %v369 = vrot.slane %v366, 4
      %v370 = vrot.slane %v368, 4
      %v371 = vsel %vm246, %v369, %v370
      %vm372 = vcmask 744448
      %v373 = vsel %vm372, %v366, %v371
      %376 = vst [vmem:[#allocation2 + $0x24] sm:$0xcc] %v373
      %377 = vst.msk [vmem:[#allocation2 + $0x2c] sm:$0xc] %vm253, %v368
      %v378 = vld [vmem:[%s210] sm:$0x3f]
      %380 = vst [vmem:[#allocation1] ss:$2 sm:$0xff] %v378
      %v381 = vld.sshfl [vmem:[#allocation1] sm:$0xff pattern:$0x75643120]
      %v383 = vld.sshfl [vmem:[#allocation1 + $0x8] sm:$0xff pattern:$0x75643120]
      %385 = vrot.lane.b32.xlu0 %v381, 90
      %v386 = vpop.permute.xlu0 %385
      %387 = vrot.lane.b32.xlu0 %v383, 90
      %v388 = vpop.permute.xlu0 %387
      %v389 = vrot.slane %v386, 4
      %v390 = vrot.slane %v388, 4
      %v391 = vsel %vm246, %v389, %v390
      %vm392 = vcmask 736256
      %v393 = vsel %vm392, %v386, %v391
      %396 = vst [vmem:[#allocation2 + $0x30] sm:$0x33] %v393
      %397 = vst.msk [vmem:[#allocation2 + $0x38] sm:$0x3] %vm230, %v388
      %v398 = vld [vmem:[%s1] sm:$0xf]
      %v399 = vld [vmem:[#allocation2] sm:$0xff]
      %v400 = vld [vmem:[#allocation2 + $0x8] sm:$0xf]
      %v401 = vld [vmem:[#allocation2 + $0xc] sm:$0xff]
      %v402 = vld [vmem:[#allocation2 + $0x14] sm:$0xf]
      %v403 = vld [vmem:[#allocation2 + $0x18] sm:$0xff]
      %v404 = vld [vmem:[#allocation2 + $0x20] sm:$0xf]
      %v405 = vld [vmem:[#allocation2 + $0x24] sm:$0xff]
      %v406 = vld [vmem:[#allocation2 + $0x2c] sm:$0xf]
      %v407 = vld [vmem:[#allocation2 + $0x30] sm:$0x33]
      %v408 = vld [vmem:[#allocation2 + $0x38] sm:$0x3]
      %v419 = vunpack.c.l.b16 %v399
      %v420 = vunpack.c.h.b16 %v399
      %v421 = vunpack.c.l.b16 %v400
      %v422 = vunpack.c.l.b16 %v401
      %v423 = vunpack.c.h.b16 %v401
      %v424 = vunpack.c.l.b16 %v402
      %v425 = vunpack.c.l.b16 %v403
      %v426 = vunpack.c.h.b16 %v403
      %v427 = vunpack.c.l.b16 %v404
      %v428 = vunpack.c.l.b16 %v405
      %v429 = vunpack.c.h.b16 %v405
      %v430 = vunpack.c.l.b16 %v406
      %v431 = vunpack.c.l.b16 %v407
      %v432 = vunpack.c.h.b16 %v407
      %v433 = vunpack.c.l.b16 %v408
      %v434 = vpack.c.b16 %v422, %v419
      %v435 = vpack.c.b16 %v423, %v420
      %v436 = vpack.c.b16 %v424, %v421
      %v437 = vpack.c.b16 %v428, %v425
      %v438 = vpack.c.b16 %v429, %v426
      %v439 = vpack.c.b16 %v430, %v427
      %v440 = vpack.c.b16 %v431, %v431
      %v441 = vpack.c.b16 %v432, %v432
      %v442 = vpack.c.b16 %v433, %v433
      %vm449 = vcmask 293888
      %v451 = vsel %vm449, %v398, 0
      %vm453 = vcmask 1041408
      %v455 = vsel %vm453, %v440, 0
      %v458 = vsel %vm453, %v441, 0
      %v461 = vsel %vm453, %v442, 0
      %463 = vmatpush.bf16.msra.mxu0 0
      %464 = vmatpush.bf16.msra.mxu0 0
      %465 = vmatpush.bf16.msra.mxu0 0
      %466 = vmatpush.bf16.msra.mxu0 0
      %467 = vmatpush.bf16.msra.mxu0 0
      %468 = vmatpush.bf16.msra.mxu0 %v455
      %469 = vmatpush.bf16.msra.mxu0 %v437
      %470 = vmatpush.bf16.msra.mxu0 %v434
      %471 = vmatmul.bf16.gmra.mxu0 %v451
      %v472 = vpop.f32.mrf.mxu0
      %v473 = vadd.f32 0.0, %v472
      %v474 = vpop.f32.mrf.mxu0
      %475 = vdwg.mxu0
      %476 = vmatpush.bf16.msra.mxu0 0
      %477 = vmatpush.bf16.msra.mxu0 0
      %478 = vmatpush.bf16.msra.mxu0 0
      %479 = vmatpush.bf16.msra.mxu0 0
      %480 = vmatpush.bf16.msra.mxu0 0
      %481 = vmatpush.bf16.msra.mxu0 %v458
      %482 = vmatpush.bf16.msra.mxu0 %v438
      %483 = vmatpush.bf16.msra.mxu0 %v435
      %484 = vmatmul.bf16.gmra.mxu0 %v451
      %v485 = vpop.f32.mrf.mxu0
      %v486 = vadd.f32 0.0, %v485
      %v487 = vpop.f32.mrf.mxu0
      %488 = vdwg.mxu0
      %489 = vmatpush.bf16.msra.mxu0 0
      %490 = vmatpush.bf16.msra.mxu0 0
      %491 = vmatpush.bf16.msra.mxu0 0
      %492 = vmatpush.bf16.msra.mxu0 0
      %493 = vmatpush.bf16.msra.mxu0 0
      %494 = vmatpush.bf16.msra.mxu0 %v461
      %495 = vmatpush.bf16.msra.mxu0 %v439
      %496 = vmatpush.bf16.msra.mxu0 %v436
      %497 = vmatmul.bf16.gmra.mxu0 %v451
      %v498 = vpop.f32.mrf.mxu0
      %v499 = vadd.f32 0.0, %v498
      %v500 = vpop.f32.mrf.mxu0
      %501 = vdwg.mxu0
      %v502 = vld [vmem:[%s2] sm:$0xff]
      %504 = vset.pattern.permute.xlu0 0
      %505 = vperm.xlu0 %504, %v502
      %v506 = vpop.permute.xlu0 %505
      %v508 = vmul.f32 %v473, %v506
      %v509 = vmul.f32 %v486, %v506
      %v510 = vmul.f32 %v499, %v506
      %v511 = vld [vmem:[%s3] sm:$0xff]
      %513 = vset.pattern.permute.xlu0 0
      %514 = vperm.xlu0 %513, %v511
      %v515 = vpop.permute.xlu0 %514
      %v517 = vadd.f32 %v508, %v515
      %v518 = vadd.f32 %v509, %v515
      %v519 = vadd.f32 %v510, %v515
      %v520 = vmax.f32 %v517, 0.0
      %v521 = vmax.f32 %v518, 0.0
      %v522 = vmax.f32 %v519, 0.0
      %523 = vst [vmem:[%s219] sm:$0xff] %v520
      %524 = vst [vmem:[%s219 + $0x8] sm:$0xff] %v521
      %vm525 = vcmask 261120
      %526 = vst.msk [vmem:[%s219 + $0x10] sm:$0xff] %vm525, %v522
      %s527 = smul.u32 3, %s20
      %p528 = scmp.lt.s32.totalorder %s19, 1
      %s529 = scalar_select %p528, %s19, 1
      %p530 = scmp.lt.s32.totalorder %s527, 2
      %s531 = scalar_select %p530, %s527, 2
      %s532 = smul.addr %s529, 3
      %s533 = sadd.s32 %s531, %s532
      %s534 = smul.addr %s533, 8
      %s535 = scalar_lea.vmem %s4, %s534
      // Predicated region
      $region37: #{conv_transpose_block.3} parent=35 // pred_check
        %p536 = pneg %p136
      $region38: #{conv_transpose_block.3} parent=35 // pred_check_branch
        %538 = sbr.rel (%p536) target = $region40
      $region39: #{conv_transpose_block.3} parent=35 // pred_region
        %s539 = smul.u32 3, %s20
      $region40: #{conv_transpose_block.3} parent=35 // pred_fallthru
        _
    $region36: #{conv_transpose_block.3} parent=5 // pred_fallthru
      _
    %p540 = scmp.le.s32.totalorder 2, %s10
    // Predicated region
    $region41: #{conv_transpose_block.3} parent=5 // pred_check
      %p541 = pneg %p540
    $region42: #{conv_transpose_block.3} parent=5 // pred_check_branch
      %543 = sbr.rel (%p541) target = $region44
    $region43: #{conv_transpose_block.3} parent=5 // pred_region
      %s544 = ssub.s32 %s10, 2
      // Predicated region
      $region45: #{conv_transpose_block.3} parent=43 // pred_check
        %p545 = pneg %p142
      $region46: #{conv_transpose_block.3} parent=43 // pred_check_branch
        %547 = sbr.rel (%p545) target = $region48
      $region47: #{conv_transpose_block.3} parent=43 // pred_region
        %s548 = smul.u32 3, %s22
        %p549 = scmp.lt.s32.totalorder %s21, 1
        %s550 = scalar_select %p549, %s21, 1
        %p551 = scmp.lt.s32.totalorder %s548, 2
        %s552 = scalar_select %p551, %s548, 2
        %s553 = smul.addr %s550, 3
        %s554 = sadd.s32 %s552, %s553
        %s555 = smul.addr %s554, 8
        %s556 = scalar_lea.vmem %s4, %s555
      $region48: #{conv_transpose_block.3} parent=43 // pred_fallthru
        _
    $region44: #{conv_transpose_block.3} parent=5 // pred_fallthru
      _
  $region6: #{conv_transpose_block.3} parent=0 // loop_footer
    %s14 = sadd.s32 1, %s10
  $region7: #{conv_transpose_block.3} parent=0 // loop_footer_branch
    %9 = sbr.rel target = $region3
  $region8: #{conv_transpose_block.3} parent=0 // loop_exit
    _

</llo_original>
